<compile_context>
chip_gen: v5e
topology: v5e:2x2
jax: 0.10.0
libtpu: 0.0.40
codegen_flags: <defaults>
</compile_context>

<pallas_src>
import jax
import jax.numpy as jnp
from jax.experimental import pallas as pl
from jax.experimental.pallas import tpu as pltpu


# ----------------------------------------------------------------------------
# Pass 1: amplitude sum-pool over the interleaved spatial axis.
# ----------------------------------------------------------------------------
def _amp_pool_kernel(x_ref, mask_ref, sum_ref, acc_ref):
    """x_ref: [TR, TL] interleaved (re, im) lanes.
    mask_ref: [1, TL] even-lane 0/1 mask.
    sum_ref: [TR, 1] per-row amplitude sum (written on last reduction step).
    acc_ref: [TR, 128] VMEM scratch holding per-lane partial sums."""
    l = pl.program_id(1)

    @pl.when(l == 0)
    def _():
        acc_ref[...] = jnp.zeros_like(acc_ref)

    x = x_ref[...]
    x2 = x * x
    tl = x2.shape[-1]
    # Bring lane i+1 (im^2) onto lane i (re^2): rolled[i] = x2[(i + 1) % TL].
    # Tiles start at even global lane offsets and TL is even, so pairing is
    # preserved within each tile; odd lanes are zeroed by the mask (the
    # roll-wrap mis-pair at lane TL-1 is odd -> masked, sqrt(0)=0 benign).
    rolled = pltpu.roll(x2, shift=tl - 1, axis=1)
    amp = jnp.sqrt((x2 + rolled) * mask_ref[...])          # even lanes: |z|

    # Fold the TL lanes down to 128 with plain VPU adds; the serializing
    # 128 -> 1 cross-lane (XLU) reduce runs only once per row tile below.
    partial = amp[:, 0:128]
    for c in range(1, tl // 128):
        partial = partial + amp[:, c * 128:(c + 1) * 128]
    acc_ref[...] += partial

    @pl.when(l == pl.num_programs(1) - 1)
    def _():
        sum_ref[...] = jnp.sum(acc_ref[...], axis=-1, keepdims=True)


# ----------------------------------------------------------------------------
# Pass 2: elementwise channel re-weighting of the interleaved data.
# ----------------------------------------------------------------------------
def _apply_scale_kernel(x_ref, s_ref, o_ref):
    """x_ref: [TR, TL]; s_ref: [TR, 1] per-(b,c) scale; o_ref: [TR, TL]."""
    o_ref[...] = x_ref[...] * s_ref[...]                   # re and im share the scale


# ----------------------------------------------------------------------------
# Tile selection (generation aware, padding fallback instead of full-extent)
# ----------------------------------------------------------------------------
_ROW_TILES = (512, 256, 128, 64, 32, 16, 8)    # multiples of 8 (sublane aligned)
_LANE_TILES = (8192, 4096, 2048, 1024, 512, 256)  # multiples of 256 (lane aligned, even)


def _vmem_capacity_bytes():
    try:
        return int(pltpu.get_tpu_info().vmem_capacity_bytes)
    except Exception:
        return 128 * 1024 * 1024               # conservative v5e/v6e default


def _choose_tiles(rows, lanes, max_block_bytes, prefer_two_row_blocks):
    elem_budget = max_block_bytes // 4          # f32 elements per block

    # Lane tile: prefer the largest exact divisor of `lanes`; otherwise the
    # candidate minimizing padded length (never a giant un-pipelined block).
    tl = None
    for c in _LANE_TILES:
        if c * _ROW_TILES[-1] > elem_budget:
            continue
        if c <= lanes and lanes % c == 0:
            tl = c
            break
    if tl is None:
        fits = [c for c in _LANE_TILES if c * _ROW_TILES[-1] <= elem_budget]
        tl = min(fits, key=lambda c: (pl.cdiv(lanes, c) * c, -c))

    # Row tile: same policy under the joint block-byte budget.
    tr = None
    for c in _ROW_TILES:
        if c * tl > elem_budget:
            continue
        if c <= rows and rows % c == 0:
            tr = c
            break
    if tr is None:
        fits = [c for c in _ROW_TILES if c * tl <= elem_budget]
        tr = min(fits, key=lambda c: (pl.cdiv(rows, c) * c, -c))

    # v7x megacore: keep >= 2 blocks on the parallel row axis when possible.
    if prefer_two_row_blocks:
        while tr > 8 and pl.cdiv(rows, tr) < 2:
            tr //= 2

    return tr, tl, pl.cdiv(rows, tr) * tr, pl.cdiv(lanes, tl) * tl


# ----------------------------------------------------------------------------
# Wrapper
# ----------------------------------------------------------------------------
def complex_channel_attention(x, w1, b1, w2, b2):
    """x: [B, C, H, W, 2] f32; w1: [C, Cr]; b1: [Cr]; w2: [Cr, C]; b2: [C]."""
    B, C, H, W, two = x.shape
    assert two == 2
    R = B * C
    L = H * W * 2                               # interleaved spatial length (even)
    x_flat = x.reshape(R, L)                    # contiguous reshape: no HBM copy

    vmem_cap = _vmem_capacity_bytes()
    v7x_class = vmem_cap <= 64 * 1024 * 1024    # 64 MiB / TC, 2 TCs -> tighter caps
    pass1_cap = (2 if v7x_class else 4) * 1024 * 1024   # pass 1 has elementwise temps
    pass2_cap = (4 if v7x_class else 8) * 1024 * 1024   # pass 2 is a single multiply
    vmem_limit = (32 if v7x_class else 64) * 1024 * 1024

    # ---- pass 1: per-(b, c) amplitude sum -----------------------------------
    tr1, tl1, Rp1, Lp1 = _choose_tiles(R, L, pass1_cap, prefer_two_row_blocks=v7x_class)
    assert tl1 % 2 == 0 and tl1 % 128 == 0, "lane tile must keep re/im pairing"

    xp1 = x_flat
    if (Rp1, Lp1) != (R, L):
        xp1 = jnp.pad(x_flat, ((0, Rp1 - R), (0, Lp1 - L)))   # zeros: amp contribution 0

    mask = jnp.tile(jnp.array([1.0, 0.0], jnp.float32), tl1 // 2).reshape(1, tl1)

    amp_sum = pl.pallas_call(
        _amp_pool_kernel,
        out_shape=jax.ShapeDtypeStruct((Rp1, 1), jnp.float32),
        grid=(Rp1 // tr1, Lp1 // tl1),
        in_specs=[
            pl.BlockSpec((tr1, tl1), lambda r, l: (r, l)),
            pl.BlockSpec((1, tl1), lambda r, l: (0, 0)),
        ],
        out_specs=pl.BlockSpec((tr1, 1), lambda r, l: (r, 0)),
        scratch_shapes=[pltpu.VMEM((tr1, 128), jnp.float32)],
        compiler_params=pltpu.CompilerParams(
            dimension_semantics=("parallel", "arbitrary"),
            vmem_limit_bytes=vmem_limit,
        ),
    )(xp1, mask)

    # ---- squeeze-excitation MLP: tiny [B,C] matmuls, keep in plain JAX ------
    y = amp_sum[:R, 0].reshape(B, C) / (H * W)              # mean amplitude [B, C]
    h = jnp.maximum(y @ w1 + b1, 0.0)
    s = jax.nn.sigmoid(h @ w2 + b2)                         # [B, C]
    s_col = s.reshape(R, 1).astype(x.dtype)

    # ---- pass 2: elementwise scale of the interleaved data ------------------
    tr2, tl2, Rp2, Lp2 = _choose_tiles(R, L, pass2_cap, prefer_two_row_blocks=v7x_class)

    xp2 = x_flat
    if (Rp2, Lp2) != (R, L):
        xp2 = jnp.pad(x_flat, ((0, Rp2 - R), (0, Lp2 - L)))
    sp2 = s_col
    if Rp2 != R:
        sp2 = jnp.pad(s_col, ((0, Rp2 - R), (0, 0)))

    out_flat = pl.pallas_call(
        _apply_scale_kernel,
        out_shape=jax.ShapeDtypeStruct((Rp2, Lp2), x.dtype),
        grid=(Rp2 // tr2, Lp2 // tl2),
        in_specs=[
            pl.BlockSpec((tr2, tl2), lambda r, l: (r, l)),
            pl.BlockSpec((tr2, 1), lambda r, l: (r, 0)),
        ],
        out_specs=pl.BlockSpec((tr2, tl2), lambda r, l: (r, l)),
        compiler_params=pltpu.CompilerParams(
            dimension_semantics=("parallel", "parallel"),
            vmem_limit_bytes=vmem_limit,
        ),
    )(xp2, sp2)

    out = out_flat
    if (Rp2, Lp2) != (R, L):
        out = out_flat[:R, :L]
    return out.reshape(B, C, H, W, 2)


# ----------------------------------------------------------------------------
# Pure-JAX reference
# ----------------------------------------------------------------------------
def _reference(x, w1, b1, w2, b2):
    amp = jnp.sqrt(x[..., 0] ** 2 + x[..., 1] ** 2)         # [B, C, H, W]
    y = jnp.mean(amp, axis=(2, 3))                          # [B, C]
    h = jnp.maximum(y @ w1 + b1, 0.0)
    s = jax.nn.sigmoid(h @ w2 + b2)                         # [B, C]
    return x * s[:, :, None, None, None]


if __name__ == "__main__":
    B, C, H, W = 2, 16, 16, 16
    reduction = 8
    Cr = C // reduction

    key = jax.random.PRNGKey(0)
    kx, k1, kb1, k2, kb2 = jax.random.split(key, 5)

    x = jax.random.normal(kx, (B, C, H, W, 2), dtype=jnp.float32)

    # Deterministic Linear-style init (uniform +-1/sqrt(fan_in)); stored [in, out].
    bound1 = 1.0 / (C ** 0.5)
    w1 = jax.random.uniform(k1, (C, Cr), jnp.float32, -bound1, bound1)
    b1 = jax.random.uniform(kb1, (Cr,), jnp.float32, -bound1, bound1)
    bound2 = 1.0 / (Cr ** 0.5)
    w2 = jax.random.uniform(k2, (Cr, C), jnp.float32, -bound2, bound2)
    b2 = jax.random.uniform(kb2, (C,), jnp.float32, -bound2, bound2)

    fwd = jax.jit(complex_channel_attention)
    out = jax.block_until_ready(fwd(x, w1, b1, w2, b2))

    ref = _reference(x, w1, b1, w2, b2)
    assert out.shape == (B, C, H, W, 2)
    assert jnp.allclose(out, ref, atol=1e-5, rtol=1e-5), "mismatch vs JAX reference"

    print("KERNEL_OK")
</pallas_src>

<mosaic_0001>
module attributes {stable_mosaic.version = 11 : i64} {
  func.func @_amp_pool_kernel(%arg0: i32, %arg1: i32, %arg2: memref<32x512xf32, #tpu.memory_space<vmem>>, %arg3: memref<1x512xf32, #tpu.memory_space<vmem>>, %arg4: memref<32x1xf32, #tpu.memory_space<vmem>>, %arg5: memref<32x128xf32, #tpu.memory_space<vmem>>) attributes {dimension_semantics = [#tpu.dimension_semantics<parallel>, #tpu.dimension_semantics<arbitrary>], iteration_bounds = array<i64: 1, 1>, scalar_prefetch = 0 : i64, scratch_operands = 1 : i64, tpu.core_type = #tpu.core_type<tc>, window_params = [{transform_indices = @transform_0, window_bounds = array<i64: 32, 512>}, {pipeline_mode = #tpu.pipeline_mode<synchronous>, transform_indices = @transform_1, window_bounds = array<i64: 1, 512>}, {transform_indices = @transform_2, window_bounds = array<i64: 32, 1>}]} {
    %c0_i32 = arith.constant 0 : i32
    %0 = arith.cmpi eq, %arg1, %c0_i32 : i32
    %1 = arith.extui %0 : i1 to i32
    %c0_i32_0 = arith.constant 0 : i32
    %2 = arith.cmpi ne, %1, %c0_i32_0 : i32
    scf.if %2 {
      %cst = arith.constant 0.000000e+00 : f32
      %24 = vector.broadcast %cst : f32 to vector<32x128xf32>
      %c0_10 = arith.constant 0 : index
      %c0_11 = arith.constant 0 : index
      %25 = vector.load %arg5[%c0_10, %c0_11] : memref<32x128xf32, #tpu.memory_space<vmem>>, vector<32x128xf32>
      tpu.vector_store %arg5[%c0_10, %c0_11], %24 {strides = array<i32>} : memref<32x128xf32, #tpu.memory_space<vmem>>, vector<32x128xf32>,
    } else {
    }
    %c0 = arith.constant 0 : index
    %c0_1 = arith.constant 0 : index
    %3 = vector.load %arg2[%c0, %c0_1] : memref<32x512xf32, #tpu.memory_space<vmem>>, vector<32x512xf32>
    %4 = arith.mulf %3, %3 : vector<32x512xf32>
    %c511_i32 = arith.constant 511 : i32
    %5 = tpu.dynamic_rotate %4 by %c511_i32 dim 1 : vector<32x512xf32>, i32 -> vector<32x512xf32>
    %6 = arith.addf %4, %5 : vector<32x512xf32>
    %c0_2 = arith.constant 0 : index
    %c0_3 = arith.constant 0 : index
    %7 = vector.load %arg3[%c0_2, %c0_3] : memref<1x512xf32, #tpu.memory_space<vmem>>, vector<1x512xf32>
    %8 = vector.broadcast %7 : vector<1x512xf32> to vector<32x512xf32>
    %9 = arith.mulf %6, %8 : vector<32x512xf32>
    %10 = math.sqrt %9 : vector<32x512xf32>
    %11 = vector.extract_strided_slice %10 {offsets = [0, 0], sizes = [32, 128], strides = [1, 1]} : vector<32x512xf32> to vector<32x128xf32>
    %12 = vector.extract_strided_slice %10 {offsets = [0, 128], sizes = [32, 128], strides = [1, 1]} : vector<32x512xf32> to vector<32x128xf32>
    %13 = arith.addf %11, %12 : vector<32x128xf32>
    %14 = vector.extract_strided_slice %10 {offsets = [0, 256], sizes = [32, 128], strides = [1, 1]} : vector<32x512xf32> to vector<32x128xf32>
    %15 = arith.addf %13, %14 : vector<32x128xf32>
    %16 = vector.extract_strided_slice %10 {offsets = [0, 384], sizes = [32, 128], strides = [1, 1]} : vector<32x512xf32> to vector<32x128xf32>
    %17 = arith.addf %15, %16 : vector<32x128xf32>
    %c0_4 = arith.constant 0 : index
    %c0_5 = arith.constant 0 : index
    %18 = vector.load %arg5[%c0_4, %c0_5] : memref<32x128xf32, #tpu.memory_space<vmem>>, vector<32x128xf32>
    %19 = arith.addf %18, %17 : vector<32x128xf32>
    %c0_6 = arith.constant 0 : index
    %c0_7 = arith.constant 0 : index
    %20 = vector.load %arg5[%c0_6, %c0_7] : memref<32x128xf32, #tpu.memory_space<vmem>>, vector<32x128xf32>
    tpu.vector_store %arg5[%c0_6, %c0_7], %19 {strides = array<i32>} : memref<32x128xf32, #tpu.memory_space<vmem>>, vector<32x128xf32>,
    %c0_i32_8 = arith.constant 0 : i32
    %21 = arith.cmpi eq, %arg1, %c0_i32_8 : i32
    %22 = arith.extui %21 : i1 to i32
    %c0_i32_9 = arith.constant 0 : i32
    %23 = arith.cmpi ne, %22, %c0_i32_9 : i32
    scf.if %23 {
      %c0_10 = arith.constant 0 : index
      %c0_11 = arith.constant 0 : index
      %24 = vector.load %arg5[%c0_10, %c0_11] : memref<32x128xf32, #tpu.memory_space<vmem>>, vector<32x128xf32>
      %cst = arith.constant dense<0.000000e+00> : vector<32xf32>
      %25 = vector.multi_reduction <add>, %24, %cst [1] : vector<32x128xf32> to vector<32xf32>
      %26 = vector.shape_cast %25 : vector<32xf32> to vector<32x1xf32>
      %c0_12 = arith.constant 0 : index
      %c0_13 = arith.constant 0 : index
      %27 = vector.load %arg4[%c0_12, %c0_13] : memref<32x1xf32, #tpu.memory_space<vmem>>, vector<32x1xf32>
      tpu.vector_store %arg4[%c0_12, %c0_13], %26 {strides = array<i32>} : memref<32x1xf32, #tpu.memory_space<vmem>>, vector<32x1xf32>,
    } else {
    }
    return
  }
  func.func @transform_0(%arg0: i32, %arg1: i32) -> (i32, i32) {
    %c0_i32 = arith.constant 0 : i32
    return %arg0, %arg1 : i32, i32
  }
  func.func @transform_1(%arg0: i32, %arg1: i32) -> (i32, i32) {
    %c0_i32 = arith.constant 0 : i32
    %c0_i32_0 = arith.constant 0 : i32
    %c0_i32_1 = arith.constant 0 : i32
    return %c0_i32, %c0_i32_0 : i32, i32
  }
  func.func @transform_2(%arg0: i32, %arg1: i32) -> (i32, i32) {
    %c0_i32 = arith.constant 0 : i32
    %c0_i32_0 = arith.constant 0 : i32
    return %arg0, %c0_i32 : i32, i32
  }
}

module attributes {stable_mosaic.version = 11 : i64} {
  func.func @_apply_scale_kernel(%arg0: i32, %arg1: i32, %arg2: memref<32x512xf32, #tpu.memory_space<vmem>>, %arg3: memref<32x1xf32, #tpu.memory_space<vmem>>, %arg4: memref<32x512xf32, #tpu.memory_space<vmem>>) attributes {dimension_semantics = [#tpu.dimension_semantics<parallel>, #tpu.dimension_semantics<parallel>], iteration_bounds = array<i64: 1, 1>, scalar_prefetch = 0 : i64, scratch_operands = 0 : i64, tpu.core_type = #tpu.core_type<tc>, window_params = [{transform_indices = @transform_0, window_bounds = array<i64: 32, 512>}, {transform_indices = @transform_1, window_bounds = array<i64: 32, 1>}, {transform_indices = @transform_2, window_bounds = array<i64: 32, 512>}]} {
    %c0 = arith.constant 0 : index
    %c0_0 = arith.constant 0 : index
    %0 = vector.load %arg2[%c0, %c0_0] : memref<32x512xf32, #tpu.memory_space<vmem>>, vector<32x512xf32>
    %c0_1 = arith.constant 0 : index
    %c0_2 = arith.constant 0 : index
    %1 = vector.load %arg3[%c0_1, %c0_2] : memref<32x1xf32, #tpu.memory_space<vmem>>, vector<32x1xf32>
    %2 = vector.broadcast %1 : vector<32x1xf32> to vector<32x512xf32>
    %3 = arith.mulf %0, %2 : vector<32x512xf32>
    %c0_3 = arith.constant 0 : index
    %c0_4 = arith.constant 0 : index
    %4 = vector.load %arg4[%c0_3, %c0_4] : memref<32x512xf32, #tpu.memory_space<vmem>>, vector<32x512xf32>
    tpu.vector_store %arg4[%c0_3, %c0_4], %3 {strides = array<i32>} : memref<32x512xf32, #tpu.memory_space<vmem>>, vector<32x512xf32>,
    return
  }
  func.func @transform_0(%arg0: i32, %arg1: i32) -> (i32, i32) {
    %c0_i32 = arith.constant 0 : i32
    return %arg0, %arg1 : i32, i32
  }
  func.func @transform_1(%arg0: i32, %arg1: i32) -> (i32, i32) {
    %c0_i32 = arith.constant 0 : i32
    %c0_i32_0 = arith.constant 0 : i32
    return %arg0, %c0_i32 : i32, i32
  }
  func.func @transform_2(%arg0: i32, %arg1: i32) -> (i32, i32) {
    %c0_i32 = arith.constant 0 : i32
    return %arg0, %arg1 : i32, i32
  }
}

</mosaic_0001>

<llo_original>
// kernel: tile.6
$region0: #{tile.6}
  #allocation0 [shape = 's32[1]{0}', space=sflag, size = 0x4, scoped, tag = 'scoped memory for tile.6']
  %s0 = inlined_call_operand.vmem [shape: f32[2], index: 0, kind: input, shape index: {}]
  %s1 = inlined_call_operand.vmem [shape: f32[256,2], index: 1, kind: output, shape index: {}]
  // Predicated region
  $region2: #{tile.6} parent=0 // pred_check
    _
  $region3: #{tile.6} parent=0 // pred_check_branch
    %3 = sbr.rel (0) target = $region5
  $region4: #{tile.6} parent=0 // pred_region
    _
  $region5: #{tile.6} parent=0 // pred_fallthru
    _
  %v4 = vld [vmem:[%s0] ss:$0 sm:$0xff]
  %5 = vst [vmem:[%s1] sm:$0xff] %v4
  %s6 = scalar_lea.vmem %s1, 8
  %7 = vst [vmem:[%s6] sm:$0xff] %v4
  %s8 = scalar_lea.vmem %s1, 16
  %9 = vst [vmem:[%s8] sm:$0xff] %v4
  %s10 = scalar_lea.vmem %s1, 24
  %11 = vst [vmem:[%s10] sm:$0xff] %v4
  %s12 = scalar_lea.vmem %s1, 32
  %13 = vst [vmem:[%s12] sm:$0xff] %v4
  %s14 = scalar_lea.vmem %s1, 40
  %15 = vst [vmem:[%s14] sm:$0xff] %v4
  %s16 = scalar_lea.vmem %s1, 48
  %17 = vst [vmem:[%s16] sm:$0xff] %v4
  %s18 = scalar_lea.vmem %s1, 56
  %19 = vst [vmem:[%s18] sm:$0xff] %v4
  %s20 = scalar_lea.vmem %s1, 64
  %21 = vst [vmem:[%s20] sm:$0xff] %v4
  %s22 = scalar_lea.vmem %s1, 72
  %23 = vst [vmem:[%s22] sm:$0xff] %v4
  %s24 = scalar_lea.vmem %s1, 80
  %25 = vst [vmem:[%s24] sm:$0xff] %v4
  %s26 = scalar_lea.vmem %s1, 88
  %27 = vst [vmem:[%s26] sm:$0xff] %v4
  %s28 = scalar_lea.vmem %s1, 96
  %29 = vst [vmem:[%s28] sm:$0xff] %v4
  %s30 = scalar_lea.vmem %s1, 104
  %31 = vst [vmem:[%s30] sm:$0xff] %v4
  %s32 = scalar_lea.vmem %s1, 112
  %33 = vst [vmem:[%s32] sm:$0xff] %v4
  %s34 = scalar_lea.vmem %s1, 120
  %35 = vst [vmem:[%s34] sm:$0xff] %v4
  %s36 = scalar_lea.vmem %s1, 128
  %37 = vst [vmem:[%s36] sm:$0xff] %v4
  %s38 = scalar_lea.vmem %s1, 136
  %39 = vst [vmem:[%s38] sm:$0xff] %v4
  %s40 = scalar_lea.vmem %s1, 144
  %41 = vst [vmem:[%s40] sm:$0xff] %v4
  %s42 = scalar_lea.vmem %s1, 152
  %43 = vst [vmem:[%s42] sm:$0xff] %v4
  %s44 = scalar_lea.vmem %s1, 160
  %45 = vst [vmem:[%s44] sm:$0xff] %v4
  %s46 = scalar_lea.vmem %s1, 168
  %47 = vst [vmem:[%s46] sm:$0xff] %v4
  %s48 = scalar_lea.vmem %s1, 176
  %49 = vst [vmem:[%s48] sm:$0xff] %v4
  %s50 = scalar_lea.vmem %s1, 184
  %51 = vst [vmem:[%s50] sm:$0xff] %v4
  %s52 = scalar_lea.vmem %s1, 192
  %53 = vst [vmem:[%s52] sm:$0xff] %v4
  %s54 = scalar_lea.vmem %s1, 200
  %55 = vst [vmem:[%s54] sm:$0xff] %v4
  %s56 = scalar_lea.vmem %s1, 208
  %57 = vst [vmem:[%s56] sm:$0xff] %v4
  %s58 = scalar_lea.vmem %s1, 216
  %59 = vst [vmem:[%s58] sm:$0xff] %v4
  %s60 = scalar_lea.vmem %s1, 224
  %61 = vst [vmem:[%s60] sm:$0xff] %v4
  %s62 = scalar_lea.vmem %s1, 232
  %63 = vst [vmem:[%s62] sm:$0xff] %v4
  %s64 = scalar_lea.vmem %s1, 240
  %65 = vst [vmem:[%s64] sm:$0xff] %v4
  %s66 = scalar_lea.vmem %s1, 248
  %67 = vst [vmem:[%s66] sm:$0xff] %v4

// kernel: tile.7
$region0: #{tile.7}
  %s0 = inlined_call_operand.vmem [shape: f32[256,2], index: 0, kind: input, shape index: {}]
  %s1 = inlined_call_operand.vmem [shape: f32[1,512], index: 1, kind: output, shape index: {}]
  $region1: #{tile.7} parent=0
    #allocation0 [shape = 'u8[16384]{0}', space=vmem, size = 0x4000, scoped, tag = 'scoped mem for output reshape']
    %v2 = vld [vmem:[%s0] sm:$0x1]
    %s3 = scalar_lea.vmem %s0, 63
    %v4 = vld [vmem:[%s3] sm:$0x2]
    %vm5 = vcmask 1041409
    %v6 = vsel %vm5, %v4, %v2
    %s7 = scalar_lea.vmem %s0, 126
    %v8 = vld [vmem:[%s7] sm:$0x4]
    %vm9 = vcmask 1042434
    %v10 = vsel %vm9, %v8, %v6
    %s11 = scalar_lea.vmem %s0, 189
    %v12 = vld [vmem:[%s11] sm:$0x8]
    %vm13 = vcmask 1043459
    %v14 = vsel %vm13, %v12, %v10
    %vm15 = vcmask 15360
    %16 = vst.msk [vmem:[#allocation0] ss:$8 sm:$0xf] %vm15, %v14
    %s17 = scalar_lea.vmem %s0, 63
    %v18 = vld [vmem:[%s17] sm:$0x1]
    %s19 = scalar_lea.vmem %s0, 126
    %v20 = vld [vmem:[%s19] sm:$0x2]
    %vm21 = vcmask 1041409
    %v22 = vsel %vm21, %v20, %v18
    %s23 = scalar_lea.vmem %s0, 189
    %v24 = vld [vmem:[%s23] sm:$0x4]
    %vm25 = vcmask 1042434
    %v26 = vsel %vm25, %v24, %v22
    %s27 = scalar_lea.vmem %s0, 252
    %v28 = vld [vmem:[%s27] sm:$0x8]
    %vm29 = vcmask 1043459
    %v30 = vsel %vm29, %v28, %v26
    %31 = vrot.lane.b32.xlu0 %v30, 126
    %v32 = vpop.permute.xlu0 %31
    %vm33 = vcmask 1048560
    %34 = vst.msk [vmem:[#allocation0] ss:$8 sm:$0xf] %vm33, %v32
    %s35 = scalar_lea.vmem %s0, 62
    %v36 = vld [vmem:[%s35] sm:$0x1]
    %s37 = scalar_lea.vmem %s0, 125
    %v38 = vld [vmem:[%s37] sm:$0x2]
    %vm39 = vcmask 1041409
    %v40 = vsel %vm39, %v38, %v36
    %s41 = scalar_lea.vmem %s0, 188
    %v42 = vld [vmem:[%s41] sm:$0x4]
    %vm43 = vcmask 1042434
    %v44 = vsel %vm43, %v42, %v40
    %s45 = scalar_lea.vmem %s0, 251
    %v46 = vld [vmem:[%s45] sm:$0x8]
    %vm47 = vcmask 1043459
    %v48 = vsel %vm47, %v46, %v44
    %49 = vrot.lane.b32.xlu0 %v48, 124
    %v50 = vpop.permute.xlu0 %49
    %vm51 = vcmask 1032160
    %52 = vst.msk [vmem:[#allocation0] ss:$8 sm:$0xf] %vm51, %v50
    %s53 = scalar_lea.vmem %s0, 61
    %v54 = vld [vmem:[%s53] sm:$0x1]
    %s55 = scalar_lea.vmem %s0, 124
    %v56 = vld [vmem:[%s55] sm:$0x2]
    %vm57 = vcmask 1041409
    %v58 = vsel %vm57, %v56, %v54
    %s59 = scalar_lea.vmem %s0, 187
    %v60 = vld [vmem:[%s59] sm:$0x4]
    %vm61 = vcmask 1042434
    %v62 = vsel %vm61, %v60, %v58
    %s63 = scalar_lea.vmem %s0, 250
    %v64 = vld [vmem:[%s63] sm:$0x8]
    %vm65 = vcmask 1043459
    %v66 = vsel %vm65, %v64, %v62
    %67 = vrot.lane.b32.xlu0 %v66, 122
    %v68 = vpop.permute.xlu0 %67
    %vm69 = vcmask 1015760
    %70 = vst.msk [vmem:[#allocation0] ss:$8 sm:$0xf] %vm69, %v68
    %s71 = scalar_lea.vmem %s0, 60
    %v72 = vld [vmem:[%s71] sm:$0x1]
    %s73 = scalar_lea.vmem %s0, 123
    %v74 = vld [vmem:[%s73] sm:$0x2]
    %vm75 = vcmask 1041409
    %v76 = vsel %vm75, %v74, %v72
    %s77 = scalar_lea.vmem %s0, 186
    %v78 = vld [vmem:[%s77] sm:$0x4]
    %vm79 = vcmask 1042434
    %v80 = vsel %vm79, %v78, %v76
    %s81 = scalar_lea.vmem %s0, 249
    %v82 = vld [vmem:[%s81] sm:$0x8]
    %vm83 = vcmask 1043459
    %v84 = vsel %vm83, %v82, %v80
    %85 = vrot.lane.b32.xlu0 %v84, 120
    %v86 = vpop.permute.xlu0 %85
    %vm87 = vcmask 999360
    %88 = vst.msk [vmem:[#allocation0] ss:$8 sm:$0xf] %vm87, %v86
    %s89 = scalar_lea.vmem %s0, 59
    %v90 = vld [vmem:[%s89] sm:$0x1]
    %s91 = scalar_lea.vmem %s0, 122
    %v92 = vld [vmem:[%s91] sm:$0x2]
    %vm93 = vcmask 1041409
    %v94 = vsel %vm93, %v92, %v90
    %s95 = scalar_lea.vmem %s0, 185
    %v96 = vld [vmem:[%s95] sm:$0x4]
    %vm97 = vcmask 1042434
    %v98 = vsel %vm97, %v96, %v94
    %s99 = scalar_lea.vmem %s0, 248
    %v100 = vld [vmem:[%s99] sm:$0x8]
    %vm101 = vcmask 1043459
    %v102 = vsel %vm101, %v100, %v98
    %103 = vrot.lane.b32.xlu0 %v102, 118
    %v104 = vpop.permute.xlu0 %103
    %vm105 = vcmask 982960
    %106 = vst.msk [vmem:[#allocation0] ss:$8 sm:$0xf] %vm105, %v104
    %s107 = scalar_lea.vmem %s0, 58
    %v108 = vld [vmem:[%s107] sm:$0x1]
    %s109 = scalar_lea.vmem %s0, 121
    %v110 = vld [vmem:[%s109] sm:$0x2]
    %vm111 = vcmask 1041409
    %v112 = vsel %vm111, %v110, %v108
    %s113 = scalar_lea.vmem %s0, 184
    %v114 = vld [vmem:[%s113] sm:$0x4]
    %vm115 = vcmask 1042434
    %v116 = vsel %vm115, %v114, %v112
    %s117 = scalar_lea.vmem %s0, 247
    %v118 = vld [vmem:[%s117] sm:$0x8]
    %vm119 = vcmask 1043459
    %v120 = vsel %vm119, %v118, %v116
    %121 = vrot.lane.b32.xlu0 %v120, 116
    %v122 = vpop.permute.xlu0 %121
    %vm123 = vcmask 966560
    %124 = vst.msk [vmem:[#allocation0] ss:$8 sm:$0xf] %vm123, %v122
    %s125 = scalar_lea.vmem %s0, 57
    %v126 = vld [vmem:[%s125] sm:$0x1]
    %s127 = scalar_lea.vmem %s0, 120
    %v128 = vld [vmem:[%s127] sm:$0x2]
    %vm129 = vcmask 1041409
    %v130 = vsel %vm129, %v128, %v126
    %s131 = scalar_lea.vmem %s0, 183
    %v132 = vld [vmem:[%s131] sm:$0x4]
    %vm133 = vcmask 1042434
    %v134 = vsel %vm133, %v132, %v130
    %s135 = scalar_lea.vmem %s0, 246
    %v136 = vld [vmem:[%s135] sm:$0x8]
    %vm137 = vcmask 1043459
    %v138 = vsel %vm137, %v136, %v134
    %139 = vrot.lane.b32.xlu0 %v138, 114
    %v140 = vpop.permute.xlu0 %139
    %vm141 = vcmask 950160
    %142 = vst.msk [vmem:[#allocation0] ss:$8 sm:$0xf] %vm141, %v140
    %s143 = scalar_lea.vmem %s0, 56
    %v144 = vld [vmem:[%s143] sm:$0x1]
    %s145 = scalar_lea.vmem %s0, 119
    %v146 = vld [vmem:[%s145] sm:$0x2]
    %vm147 = vcmask 1041409
    %v148 = vsel %vm147, %v146, %v144
    %s149 = scalar_lea.vmem %s0, 182
    %v150 = vld [vmem:[%s149] sm:$0x4]
    %vm151 = vcmask 1042434
    %v152 = vsel %vm151, %v150, %v148
    %s153 = scalar_lea.vmem %s0, 245
    %v154 = vld [vmem:[%s153] sm:$0x8]
    %vm155 = vcmask 1043459
    %v156 = vsel %vm155, %v154, %v152
    %157 = vrot.lane.b32.xlu0 %v156, 112
    %v158 = vpop.permute.xlu0 %157
    %vm159 = vcmask 933760
    %160 = vst.msk [vmem:[#allocation0] ss:$8 sm:$0xf] %vm159, %v158
    %s161 = scalar_lea.vmem %s0, 55
    %v162 = vld [vmem:[%s161] sm:$0x1]
    %s163 = scalar_lea.vmem %s0, 118
    %v164 = vld [vmem:[%s163] sm:$0x2]
    %vm165 = vcmask 1041409
    %v166 = vsel %vm165, %v164, %v162
    %s167 = scalar_lea.vmem %s0, 181
    %v168 = vld [vmem:[%s167] sm:$0x4]
    %vm169 = vcmask 1042434
    %v170 = vsel %vm169, %v168, %v166
    %s171 = scalar_lea.vmem %s0, 244
    %v172 = vld [vmem:[%s171] sm:$0x8]
    %vm173 = vcmask 1043459
    %v174 = vsel %vm173, %v172, %v170
    %175 = vrot.lane.b32.xlu0 %v174, 110
    %v176 = vpop.permute.xlu0 %175
    %vm177 = vcmask 917360
    %178 = vst.msk [vmem:[#allocation0] ss:$8 sm:$0xf] %vm177, %v176
    %s179 = scalar_lea.vmem %s0, 54
    %v180 = vld [vmem:[%s179] sm:$0x1]
    %s181 = scalar_lea.vmem %s0, 117
    %v182 = vld [vmem:[%s181] sm:$0x2]
    %vm183 = vcmask 1041409
    %v184 = vsel %vm183, %v182, %v180
    %s185 = scalar_lea.vmem %s0, 180
    %v186 = vld [vmem:[%s185] sm:$0x4]
    %vm187 = vcmask 1042434
    %v188 = vsel %vm187, %v186, %v184
    %s189 = scalar_lea.vmem %s0, 243
    %v190 = vld [vmem:[%s189] sm:$0x8]
    %vm191 = vcmask 1043459
    %v192 = vsel %vm191, %v190, %v188
    %193 = vrot.lane.b32.xlu0 %v192, 108
    %v194 = vpop.permute.xlu0 %193
    %vm195 = vcmask 900960
    %196 = vst.msk [vmem:[#allocation0] ss:$8 sm:$0xf] %vm195, %v194
    %s197 = scalar_lea.vmem %s0, 53
    %v198 = vld [vmem:[%s197] sm:$0x1]
    %s199 = scalar_lea.vmem %s0, 116
    %v200 = vld [vmem:[%s199] sm:$0x2]
    %vm201 = vcmask 1041409
    %v202 = vsel %vm201, %v200, %v198
    %s203 = scalar_lea.vmem %s0, 179
    %v204 = vld [vmem:[%s203] sm:$0x4]
    %vm205 = vcmask 1042434
    %v206 = vsel %vm205, %v204, %v202
    %s207 = scalar_lea.vmem %s0, 242
    %v208 = vld [vmem:[%s207] sm:$0x8]
    %vm209 = vcmask 1043459
    %v210 = vsel %vm209, %v208, %v206
    %211 = vrot.lane.b32.xlu0 %v210, 106
    %v212 = vpop.permute.xlu0 %211
    %vm213 = vcmask 884560
    %214 = vst.msk [vmem:[#allocation0] ss:$8 sm:$0xf] %vm213, %v212
    %s215 = scalar_lea.vmem %s0, 52
    %v216 = vld [vmem:[%s215] sm:$0x1]
    %s217 = scalar_lea.vmem %s0, 115
    %v218 = vld [vmem:[%s217] sm:$0x2]
    %vm219 = vcmask 1041409
    %v220 = vsel %vm219, %v218, %v216
    %s221 = scalar_lea.vmem %s0, 178
    %v222 = vld [vmem:[%s221] sm:$0x4]
    %vm223 = vcmask 1042434
    %v224 = vsel %vm223, %v222, %v220
    %s225 = scalar_lea.vmem %s0, 241
    %v226 = vld [vmem:[%s225] sm:$0x8]
    %vm227 = vcmask 1043459
    %v228 = vsel %vm227, %v226, %v224
    %229 = vrot.lane.b32.xlu0 %v228, 104
    %v230 = vpop.permute.xlu0 %229
    %vm231 = vcmask 868160
    %232 = vst.msk [vmem:[#allocation0] ss:$8 sm:$0xf] %vm231, %v230
    %s233 = scalar_lea.vmem %s0, 51
    %v234 = vld [vmem:[%s233] sm:$0x1]
    %s235 = scalar_lea.vmem %s0, 114
    %v236 = vld [vmem:[%s235] sm:$0x2]
    %vm237 = vcmask 1041409
    %v238 = vsel %vm237, %v236, %v234
    %s239 = scalar_lea.vmem %s0, 177
    %v240 = vld [vmem:[%s239] sm:$0x4]
    %vm241 = vcmask 1042434
    %v242 = vsel %vm241, %v240, %v238
    %s243 = scalar_lea.vmem %s0, 240
    %v244 = vld [vmem:[%s243] sm:$0x8]
    %vm245 = vcmask 1043459
    %v246 = vsel %vm245, %v244, %v242
    %247 = vrot.lane.b32.xlu0 %v246, 102
    %v248 = vpop.permute.xlu0 %247
    %vm249 = vcmask 851760
    %250 = vst.msk [vmem:[#allocation0] ss:$8 sm:$0xf] %vm249, %v248
    %s251 = scalar_lea.vmem %s0, 50
    %v252 = vld [vmem:[%s251] sm:$0x1]
    %s253 = scalar_lea.vmem %s0, 113
    %v254 = vld [vmem:[%s253] sm:$0x2]
    %vm255 = vcmask 1041409
    %v256 = vsel %vm255, %v254, %v252
    %s257 = scalar_lea.vmem %s0, 176
    %v258 = vld [vmem:[%s257] sm:$0x4]
    %vm259 = vcmask 1042434
    %v260 = vsel %vm259, %v258, %v256
    %s261 = scalar_lea.vmem %s0, 239
    %v262 = vld [vmem:[%s261] sm:$0x8]
    %vm263 = vcmask 1043459
    %v264 = vsel %vm263, %v262, %v260
    %265 = vrot.lane.b32.xlu0 %v264, 100
    %v266 = vpop.permute.xlu0 %265
    %vm267 = vcmask 835360
    %268 = vst.msk [vmem:[#allocation0] ss:$8 sm:$0xf] %vm267, %v266
    %s269 = scalar_lea.vmem %s0, 49
    %v270 = vld [vmem:[%s269] sm:$0x1]
    %s271 = scalar_lea.vmem %s0, 112
    %v272 = vld [vmem:[%s271] sm:$0x2]
    %vm273 = vcmask 1041409
    %v274 = vsel %vm273, %v272, %v270
    %s275 = scalar_lea.vmem %s0, 175
    %v276 = vld [vmem:[%s275] sm:$0x4]
    %vm277 = vcmask 1042434
    %v278 = vsel %vm277, %v276, %v274
    %s279 = scalar_lea.vmem %s0, 238
    %v280 = vld [vmem:[%s279] sm:$0x8]
    %vm281 = vcmask 1043459
    %v282 = vsel %vm281, %v280, %v278
    %283 = vrot.lane.b32.xlu0 %v282, 98
    %v284 = vpop.permute.xlu0 %283
    %vm285 = vcmask 818960
    %286 = vst.msk [vmem:[#allocation0] ss:$8 sm:$0xf] %vm285, %v284
    %s287 = scalar_lea.vmem %s0, 48
    %v288 = vld [vmem:[%s287] sm:$0x1]
    %s289 = scalar_lea.vmem %s0, 111
    %v290 = vld [vmem:[%s289] sm:$0x2]
    %vm291 = vcmask 1041409
    %v292 = vsel %vm291, %v290, %v288
    %s293 = scalar_lea.vmem %s0, 174
    %v294 = vld [vmem:[%s293] sm:$0x4]
    %vm295 = vcmask 1042434
    %v296 = vsel %vm295, %v294, %v292
    %s297 = scalar_lea.vmem %s0, 237
    %v298 = vld [vmem:[%s297] sm:$0x8]
    %vm299 = vcmask 1043459
    %v300 = vsel %vm299, %v298, %v296
    %301 = vrot.lane.b32.xlu0 %v300, 96
    %v302 = vpop.permute.xlu0 %301
    %vm303 = vcmask 802560
    %304 = vst.msk [vmem:[#allocation0] ss:$8 sm:$0xf] %vm303, %v302
    %s305 = scalar_lea.vmem %s0, 47
    %v306 = vld [vmem:[%s305] sm:$0x1]
    %s307 = scalar_lea.vmem %s0, 110
    %v308 = vld [vmem:[%s307] sm:$0x2]
    %vm309 = vcmask 1041409
    %v310 = vsel %vm309, %v308, %v306
    %s311 = scalar_lea.vmem %s0, 173
    %v312 = vld [vmem:[%s311] sm:$0x4]
    %vm313 = vcmask 1042434
    %v314 = vsel %vm313, %v312, %v310
    %s315 = scalar_lea.vmem %s0, 236
    %v316 = vld [vmem:[%s315] sm:$0x8]
    %vm317 = vcmask 1043459
    %v318 = vsel %vm317, %v316, %v314
    %319 = vrot.lane.b32.xlu0 %v318, 94
    %v320 = vpop.permute.xlu0 %319
    %vm321 = vcmask 786160
    %322 = vst.msk [vmem:[#allocation0] ss:$8 sm:$0xf] %vm321, %v320
    %s323 = scalar_lea.vmem %s0, 46
    %v324 = vld [vmem:[%s323] sm:$0x1]
    %s325 = scalar_lea.vmem %s0, 109
    %v326 = vld [vmem:[%s325] sm:$0x2]
    %vm327 = vcmask 1041409
    %v328 = vsel %vm327, %v326, %v324
    %s329 = scalar_lea.vmem %s0, 172
    %v330 = vld [vmem:[%s329] sm:$0x4]
    %vm331 = vcmask 1042434
    %v332 = vsel %vm331, %v330, %v328
    %s333 = scalar_lea.vmem %s0, 235
    %v334 = vld [vmem:[%s333] sm:$0x8]
    %vm335 = vcmask 1043459
    %v336 = vsel %vm335, %v334, %v332
    %337 = vrot.lane.b32.xlu0 %v336, 92
    %v338 = vpop.permute.xlu0 %337
    %vm339 = vcmask 769760
    %340 = vst.msk [vmem:[#allocation0] ss:$8 sm:$0xf] %vm339, %v338
    %s341 = scalar_lea.vmem %s0, 45
    %v342 = vld [vmem:[%s341] sm:$0x1]
    %s343 = scalar_lea.vmem %s0, 108
    %v344 = vld [vmem:[%s343] sm:$0x2]
    %vm345 = vcmask 1041409
    %v346 = vsel %vm345, %v344, %v342
    %s347 = scalar_lea.vmem %s0, 171
    %v348 = vld [vmem:[%s347] sm:$0x4]
    %vm349 = vcmask 1042434
    %v350 = vsel %vm349, %v348, %v346
    %s351 = scalar_lea.vmem %s0, 234
    %v352 = vld [vmem:[%s351] sm:$0x8]
    %vm353 = vcmask 1043459
    %v354 = vsel %vm353, %v352, %v350
    %355 = vrot.lane.b32.xlu0 %v354, 90
    %v356 = vpop.permute.xlu0 %355
    %vm357 = vcmask 753360
    %358 = vst.msk [vmem:[#allocation0] ss:$8 sm:$0xf] %vm357, %v356
    %s359 = scalar_lea.vmem %s0, 44
    %v360 = vld [vmem:[%s359] sm:$0x1]
    %s361 = scalar_lea.vmem %s0, 107
    %v362 = vld [vmem:[%s361] sm:$0x2]
    %vm363 = vcmask 1041409
    %v364 = vsel %vm363, %v362, %v360
    %s365 = scalar_lea.vmem %s0, 170
    %v366 = vld [vmem:[%s365] sm:$0x4]
    %vm367 = vcmask 1042434
    %v368 = vsel %vm367, %v366, %v364
    %s369 = scalar_lea.vmem %s0, 233
    %v370 = vld [vmem:[%s369] sm:$0x8]
    %vm371 = vcmask 1043459
    %v372 = vsel %vm371, %v370, %v368
    %373 = vrot.lane.b32.xlu0 %v372, 88
    %v374 = vpop.permute.xlu0 %373
    %vm375 = vcmask 736960
    %376 = vst.msk [vmem:[#allocation0] ss:$8 sm:$0xf] %vm375, %v374
    %s377 = scalar_lea.vmem %s0, 43
    %v378 = vld [vmem:[%s377] sm:$0x1]
    %s379 = scalar_lea.vmem %s0, 106
    %v380 = vld [vmem:[%s379] sm:$0x2]
    %vm381 = vcmask 1041409
    %v382 = vsel %vm381, %v380, %v378
    %s383 = scalar_lea.vmem %s0, 169
    %v384 = vld [vmem:[%s383] sm:$0x4]
    %vm385 = vcmask 1042434
    %v386 = vsel %vm385, %v384, %v382
    %s387 = scalar_lea.vmem %s0, 232
    %v388 = vld [vmem:[%s387] sm:$0x8]
    %vm389 = vcmask 1043459
    %v390 = vsel %vm389, %v388, %v386
    %391 = vrot.lane.b32.xlu0 %v390, 86
    %v392 = vpop.permute.xlu0 %391
    %vm393 = vcmask 720560
    %394 = vst.msk [vmem:[#allocation0] ss:$8 sm:$0xf] %vm393, %v392
    %s395 = scalar_lea.vmem %s0, 42
    %v396 = vld [vmem:[%s395] sm:$0x1]
    %s397 = scalar_lea.vmem %s0, 105
    %v398 = vld [vmem:[%s397] sm:$0x2]
    %vm399 = vcmask 1041409
    %v400 = vsel %vm399, %v398, %v396
    %s401 = scalar_lea.vmem %s0, 168
    %v402 = vld [vmem:[%s401] sm:$0x4]
    %vm403 = vcmask 1042434
    %v404 = vsel %vm403, %v402, %v400
    %s405 = scalar_lea.vmem %s0, 231
    %v406 = vld [vmem:[%s405] sm:$0x8]
    %vm407 = vcmask 1043459
    %v408 = vsel %vm407, %v406, %v404
    %409 = vrot.lane.b32.xlu0 %v408, 84
    %v410 = vpop.permute.xlu0 %409
    %vm411 = vcmask 704160
    %412 = vst.msk [vmem:[#allocation0] ss:$8 sm:$0xf] %vm411, %v410
    %s413 = scalar_lea.vmem %s0, 41
    %v414 = vld [vmem:[%s413] sm:$0x1]
    %s415 = scalar_lea.vmem %s0, 104
    %v416 = vld [vmem:[%s415] sm:$0x2]
    %vm417 = vcmask 1041409
    %v418 = vsel %vm417, %v416, %v414
    %s419 = scalar_lea.vmem %s0, 167
    %v420 = vld [vmem:[%s419] sm:$0x4]
    %vm421 = vcmask 1042434
    %v422 = vsel %vm421, %v420, %v418
    %s423 = scalar_lea.vmem %s0, 230
    %v424 = vld [vmem:[%s423] sm:$0x8]
    %vm425 = vcmask 1043459
    %v426 = vsel %vm425, %v424, %v422
    %427 = vrot.lane.b32.xlu0 %v426, 82
    %v428 = vpop.permute.xlu0 %427
    %vm429 = vcmask 687760
    %430 = vst.msk [vmem:[#allocation0] ss:$8 sm:$0xf] %vm429, %v428
    %s431 = scalar_lea.vmem %s0, 40
    %v432 = vld [vmem:[%s431] sm:$0x1]
    %s433 = scalar_lea.vmem %s0, 103
    %v434 = vld [vmem:[%s433] sm:$0x2]
    %vm435 = vcmask 1041409
    %v436 = vsel %vm435, %v434, %v432
    %s437 = scalar_lea.vmem %s0, 166
    %v438 = vld [vmem:[%s437] sm:$0x4]
    %vm439 = vcmask 1042434
    %v440 = vsel %vm439, %v438, %v436
    %s441 = scalar_lea.vmem %s0, 229
    %v442 = vld [vmem:[%s441] sm:$0x8]
    %vm443 = vcmask 1043459
    %v444 = vsel %vm443, %v442, %v440
    %445 = vrot.lane.b32.xlu0 %v444, 80
    %v446 = vpop.permute.xlu0 %445
    %vm447 = vcmask 671360
    %448 = vst.msk [vmem:[#allocation0] ss:$8 sm:$0xf] %vm447, %v446
    %s449 = scalar_lea.vmem %s0, 39
    %v450 = vld [vmem:[%s449] sm:$0x1]
    %s451 = scalar_lea.vmem %s0, 102
    %v452 = vld [vmem:[%s451] sm:$0x2]
    %vm453 = vcmask 1041409
    %v454 = vsel %vm453, %v452, %v450
    %s455 = scalar_lea.vmem %s0, 165
    %v456 = vld [vmem:[%s455] sm:$0x4]
    %vm457 = vcmask 1042434
    %v458 = vsel %vm457, %v456, %v454
    %s459 = scalar_lea.vmem %s0, 228
    %v460 = vld [vmem:[%s459] sm:$0x8]
    %vm461 = vcmask 1043459
    %v462 = vsel %vm461, %v460, %v458
    %463 = vrot.lane.b32.xlu0 %v462, 78
    %v464 = vpop.permute.xlu0 %463
    %vm465 = vcmask 654960
    %466 = vst.msk [vmem:[#allocation0] ss:$8 sm:$0xf] %vm465, %v464
    %s467 = scalar_lea.vmem %s0, 38
    %v468 = vld [vmem:[%s467] sm:$0x1]
    %s469 = scalar_lea.vmem %s0, 101
    %v470 = vld [vmem:[%s469] sm:$0x2]
    %vm471 = vcmask 1041409
    %v472 = vsel %vm471, %v470, %v468
    %s473 = scalar_lea.vmem %s0, 164
    %v474 = vld [vmem:[%s473] sm:$0x4]
    %vm475 = vcmask 1042434
    %v476 = vsel %vm475, %v474, %v472
    %s477 = scalar_lea.vmem %s0, 227
    %v478 = vld [vmem:[%s477] sm:$0x8]
    %vm479 = vcmask 1043459
    %v480 = vsel %vm479, %v478, %v476
    %481 = vrot.lane.b32.xlu0 %v480, 76
    %v482 = vpop.permute.xlu0 %481
    %vm483 = vcmask 638560
    %484 = vst.msk [vmem:[#allocation0] ss:$8 sm:$0xf] %vm483, %v482
    %s485 = scalar_lea.vmem %s0, 37
    %v486 = vld [vmem:[%s485] sm:$0x1]
    %s487 = scalar_lea.vmem %s0, 100
    %v488 = vld [vmem:[%s487] sm:$0x2]
    %vm489 = vcmask 1041409
    %v490 = vsel %vm489, %v488, %v486
    %s491 = scalar_lea.vmem %s0, 163
    %v492 = vld [vmem:[%s491] sm:$0x4]
    %vm493 = vcmask 1042434
    %v494 = vsel %vm493, %v492, %v490
    %s495 = scalar_lea.vmem %s0, 226
    %v496 = vld [vmem:[%s495] sm:$0x8]
    %vm497 = vcmask 1043459
    %v498 = vsel %vm497, %v496, %v494
    %499 = vrot.lane.b32.xlu0 %v498, 74
    %v500 = vpop.permute.xlu0 %499
    %vm501 = vcmask 622160
    %502 = vst.msk [vmem:[#allocation0] ss:$8 sm:$0xf] %vm501, %v500
    %s503 = scalar_lea.vmem %s0, 36
    %v504 = vld [vmem:[%s503] sm:$0x1]
    %s505 = scalar_lea.vmem %s0, 99
    %v506 = vld [vmem:[%s505] sm:$0x2]
    %vm507 = vcmask 1041409
    %v508 = vsel %vm507, %v506, %v504
    %s509 = scalar_lea.vmem %s0, 162
    %v510 = vld [vmem:[%s509] sm:$0x4]
    %vm511 = vcmask 1042434
    %v512 = vsel %vm511, %v510, %v508
    %s513 = scalar_lea.vmem %s0, 225
    %v514 = vld [vmem:[%s513] sm:$0x8]
    %vm515 = vcmask 1043459
    %v516 = vsel %vm515, %v514, %v512
    %517 = vrot.lane.b32.xlu0 %v516, 72
    %v518 = vpop.permute.xlu0 %517
    %vm519 = vcmask 605760
    %520 = vst.msk [vmem:[#allocation0] ss:$8 sm:$0xf] %vm519, %v518
    %s521 = scalar_lea.vmem %s0, 35
    %v522 = vld [vmem:[%s521] sm:$0x1]
    %s523 = scalar_lea.vmem %s0, 98
    %v524 = vld [vmem:[%s523] sm:$0x2]
    %vm525 = vcmask 1041409
    %v526 = vsel %vm525, %v524, %v522
    %s527 = scalar_lea.vmem %s0, 161
    %v528 = vld [vmem:[%s527] sm:$0x4]
    %vm529 = vcmask 1042434
    %v530 = vsel %vm529, %v528, %v526
    %s531 = scalar_lea.vmem %s0, 224
    %v532 = vld [vmem:[%s531] sm:$0x8]
    %vm533 = vcmask 1043459
    %v534 = vsel %vm533, %v532, %v530
    %535 = vrot.lane.b32.xlu0 %v534, 70
    %v536 = vpop.permute.xlu0 %535
    %vm537 = vcmask 589360
    %538 = vst.msk [vmem:[#allocation0] ss:$8 sm:$0xf] %vm537, %v536
    %s539 = scalar_lea.vmem %s0, 34
    %v540 = vld [vmem:[%s539] sm:$0x1]
    %s541 = scalar_lea.vmem %s0, 97
    %v542 = vld [vmem:[%s541] sm:$0x2]
    %vm543 = vcmask 1041409
    %v544 = vsel %vm543, %v542, %v540
    %s545 = scalar_lea.vmem %s0, 160
    %v546 = vld [vmem:[%s545] sm:$0x4]
    %vm547 = vcmask 1042434
    %v548 = vsel %vm547, %v546, %v544
    %s549 = scalar_lea.vmem %s0, 223
    %v550 = vld [vmem:[%s549] sm:$0x8]
    %vm551 = vcmask 1043459
    %v552 = vsel %vm551, %v550, %v548
    %553 = vrot.lane.b32.xlu0 %v552, 68
    %v554 = vpop.permute.xlu0 %553
    %vm555 = vcmask 572960
    %556 = vst.msk [vmem:[#allocation0] ss:$8 sm:$0xf] %vm555, %v554
    %s557 = scalar_lea.vmem %s0, 33
    %v558 = vld [vmem:[%s557] sm:$0x1]
    %s559 = scalar_lea.vmem %s0, 96
    %v560 = vld [vmem:[%s559] sm:$0x2]
    %vm561 = vcmask 1041409
    %v562 = vsel %vm561, %v560, %v558
    %s563 = scalar_lea.vmem %s0, 159
    %v564 = vld [vmem:[%s563] sm:$0x4]
    %vm565 = vcmask 1042434
    %v566 = vsel %vm565, %v564, %v562
    %s567 = scalar_lea.vmem %s0, 222
    %v568 = vld [vmem:[%s567] sm:$0x8]
    %vm569 = vcmask 1043459
    %v570 = vsel %vm569, %v568, %v566
    %571 = vrot.lane.b32.xlu0 %v570, 66
    %v572 = vpop.permute.xlu0 %571
    %vm573 = vcmask 556560
    %574 = vst.msk [vmem:[#allocation0] ss:$8 sm:$0xf] %vm573, %v572
    %s575 = scalar_lea.vmem %s0, 32
    %v576 = vld [vmem:[%s575] sm:$0x1]
    %s577 = scalar_lea.vmem %s0, 95
    %v578 = vld [vmem:[%s577] sm:$0x2]
    %vm579 = vcmask 1041409
    %v580 = vsel %vm579, %v578, %v576
    %s581 = scalar_lea.vmem %s0, 158
    %v582 = vld [vmem:[%s581] sm:$0x4]
    %vm583 = vcmask 1042434
    %v584 = vsel %vm583, %v582, %v580
    %s585 = scalar_lea.vmem %s0, 221
    %v586 = vld [vmem:[%s585] sm:$0x8]
    %vm587 = vcmask 1043459
    %v588 = vsel %vm587, %v586, %v584
    %589 = vrot.lane.b32.xlu0 %v588, 64
    %v590 = vpop.permute.xlu0 %589
    %vm591 = vcmask 540160
    %592 = vst.msk [vmem:[#allocation0] ss:$8 sm:$0xf] %vm591, %v590
    %s593 = scalar_lea.vmem %s0, 31
    %v594 = vld [vmem:[%s593] sm:$0x1]
    %s595 = scalar_lea.vmem %s0, 94
    %v596 = vld [vmem:[%s595] sm:$0x2]
    %vm597 = vcmask 1041409
    %v598 = vsel %vm597, %v596, %v594
    %s599 = scalar_lea.vmem %s0, 157
    %v600 = vld [vmem:[%s599] sm:$0x4]
    %vm601 = vcmask 1042434
    %v602 = vsel %vm601, %v600, %v598
    %s603 = scalar_lea.vmem %s0, 220
    %v604 = vld [vmem:[%s603] sm:$0x8]
    %vm605 = vcmask 1043459
    %v606 = vsel %vm605, %v604, %v602
    %607 = vrot.lane.b32.xlu0 %v606, 62
    %v608 = vpop.permute.xlu0 %607
    %vm609 = vcmask 523760
    %610 = vst.msk [vmem:[#allocation0] ss:$8 sm:$0xf] %vm609, %v608
    %s611 = scalar_lea.vmem %s0, 30
    %v612 = vld [vmem:[%s611] sm:$0x1]
    %s613 = scalar_lea.vmem %s0, 93
    %v614 = vld [vmem:[%s613] sm:$0x2]
    %vm615 = vcmask 1041409
    %v616 = vsel %vm615, %v614, %v612
    %s617 = scalar_lea.vmem %s0, 156
    %v618 = vld [vmem:[%s617] sm:$0x4]
    %vm619 = vcmask 1042434
    %v620 = vsel %vm619, %v618, %v616
    %s621 = scalar_lea.vmem %s0, 219
    %v622 = vld [vmem:[%s621] sm:$0x8]
    %vm623 = vcmask 1043459
    %v624 = vsel %vm623, %v622, %v620
    %625 = vrot.lane.b32.xlu0 %v624, 60
    %v626 = vpop.permute.xlu0 %625
    %vm627 = vcmask 507360
    %628 = vst.msk [vmem:[#allocation0] ss:$8 sm:$0xf] %vm627, %v626
    %s629 = scalar_lea.vmem %s0, 29
    %v630 = vld [vmem:[%s629] sm:$0x1]
    %s631 = scalar_lea.vmem %s0, 92
    %v632 = vld [vmem:[%s631] sm:$0x2]
    %vm633 = vcmask 1041409
    %v634 = vsel %vm633, %v632, %v630
    %s635 = scalar_lea.vmem %s0, 155
    %v636 = vld [vmem:[%s635] sm:$0x4]
    %vm637 = vcmask 1042434
    %v638 = vsel %vm637, %v636, %v634
    %s639 = scalar_lea.vmem %s0, 218
    %v640 = vld [vmem:[%s639] sm:$0x8]
    %vm641 = vcmask 1043459
    %v642 = vsel %vm641, %v640, %v638
    %643 = vrot.lane.b32.xlu0 %v642, 58
    %v644 = vpop.permute.xlu0 %643
    %vm645 = vcmask 490960
    %646 = vst.msk [vmem:[#allocation0] ss:$8 sm:$0xf] %vm645, %v644
    %s647 = scalar_lea.vmem %s0, 28
    %v648 = vld [vmem:[%s647] sm:$0x1]
    %s649 = scalar_lea.vmem %s0, 91
    %v650 = vld [vmem:[%s649] sm:$0x2]
    %vm651 = vcmask 1041409
    %v652 = vsel %vm651, %v650, %v648
    %s653 = scalar_lea.vmem %s0, 154
    %v654 = vld [vmem:[%s653] sm:$0x4]
    %vm655 = vcmask 1042434
    %v656 = vsel %vm655, %v654, %v652
    %s657 = scalar_lea.vmem %s0, 217
    %v658 = vld [vmem:[%s657] sm:$0x8]
    %vm659 = vcmask 1043459
    %v660 = vsel %vm659, %v658, %v656
    %661 = vrot.lane.b32.xlu0 %v660, 56
    %v662 = vpop.permute.xlu0 %661
    %vm663 = vcmask 474560
    %664 = vst.msk [vmem:[#allocation0] ss:$8 sm:$0xf] %vm663, %v662
    %s665 = scalar_lea.vmem %s0, 27
    %v666 = vld [vmem:[%s665] sm:$0x1]
    %s667 = scalar_lea.vmem %s0, 90
    %v668 = vld [vmem:[%s667] sm:$0x2]
    %vm669 = vcmask 1041409
    %v670 = vsel %vm669, %v668, %v666
    %s671 = scalar_lea.vmem %s0, 153
    %v672 = vld [vmem:[%s671] sm:$0x4]
    %vm673 = vcmask 1042434
    %v674 = vsel %vm673, %v672, %v670
    %s675 = scalar_lea.vmem %s0, 216
    %v676 = vld [vmem:[%s675] sm:$0x8]
    %vm677 = vcmask 1043459
    %v678 = vsel %vm677, %v676, %v674
    %679 = vrot.lane.b32.xlu0 %v678, 54
    %v680 = vpop.permute.xlu0 %679
    %vm681 = vcmask 458160
    %682 = vst.msk [vmem:[#allocation0] ss:$8 sm:$0xf] %vm681, %v680
    %s683 = scalar_lea.vmem %s0, 26
    %v684 = vld [vmem:[%s683] sm:$0x1]
    %s685 = scalar_lea.vmem %s0, 89
    %v686 = vld [vmem:[%s685] sm:$0x2]
    %vm687 = vcmask 1041409
    %v688 = vsel %vm687, %v686, %v684
    %s689 = scalar_lea.vmem %s0, 152
    %v690 = vld [vmem:[%s689] sm:$0x4]
    %vm691 = vcmask 1042434
    %v692 = vsel %vm691, %v690, %v688
    %s693 = scalar_lea.vmem %s0, 215
    %v694 = vld [vmem:[%s693] sm:$0x8]
    %vm695 = vcmask 1043459
    %v696 = vsel %vm695, %v694, %v692
    %697 = vrot.lane.b32.xlu0 %v696, 52
    %v698 = vpop.permute.xlu0 %697
    %vm699 = vcmask 441760
    %700 = vst.msk [vmem:[#allocation0] ss:$8 sm:$0xf] %vm699, %v698
    %s701 = scalar_lea.vmem %s0, 25
    %v702 = vld [vmem:[%s701] sm:$0x1]
    %s703 = scalar_lea.vmem %s0, 88
    %v704 = vld [vmem:[%s703] sm:$0x2]
    %vm705 = vcmask 1041409
    %v706 = vsel %vm705, %v704, %v702
    %s707 = scalar_lea.vmem %s0, 151
    %v708 = vld [vmem:[%s707] sm:$0x4]
    %vm709 = vcmask 1042434
    %v710 = vsel %vm709, %v708, %v706
    %s711 = scalar_lea.vmem %s0, 214
    %v712 = vld [vmem:[%s711] sm:$0x8]
    %vm713 = vcmask 1043459
    %v714 = vsel %vm713, %v712, %v710
    %715 = vrot.lane.b32.xlu0 %v714, 50
    %v716 = vpop.permute.xlu0 %715
    %vm717 = vcmask 425360
    %718 = vst.msk [vmem:[#allocation0] ss:$8 sm:$0xf] %vm717, %v716
    %s719 = scalar_lea.vmem %s0, 24
    %v720 = vld [vmem:[%s719] sm:$0x1]
    %s721 = scalar_lea.vmem %s0, 87
    %v722 = vld [vmem:[%s721] sm:$0x2]
    %vm723 = vcmask 1041409
    %v724 = vsel %vm723, %v722, %v720
    %s725 = scalar_lea.vmem %s0, 150
    %v726 = vld [vmem:[%s725] sm:$0x4]
    %vm727 = vcmask 1042434
    %v728 = vsel %vm727, %v726, %v724
    %s729 = scalar_lea.vmem %s0, 213
    %v730 = vld [vmem:[%s729] sm:$0x8]
    %vm731 = vcmask 1043459
    %v732 = vsel %vm731, %v730, %v728
    %733 = vrot.lane.b32.xlu0 %v732, 48
    %v734 = vpop.permute.xlu0 %733
    %vm735 = vcmask 408960
    %736 = vst.msk [vmem:[#allocation0] ss:$8 sm:$0xf] %vm735, %v734
    %s737 = scalar_lea.vmem %s0, 23
    %v738 = vld [vmem:[%s737] sm:$0x1]
    %s739 = scalar_lea.vmem %s0, 86
    %v740 = vld [vmem:[%s739] sm:$0x2]
    %vm741 = vcmask 1041409
    %v742 = vsel %vm741, %v740, %v738
    %s743 = scalar_lea.vmem %s0, 149
    %v744 = vld [vmem:[%s743] sm:$0x4]
    %vm745 = vcmask 1042434
    %v746 = vsel %vm745, %v744, %v742
    %s747 = scalar_lea.vmem %s0, 212
    %v748 = vld [vmem:[%s747] sm:$0x8]
    %vm749 = vcmask 1043459
    %v750 = vsel %vm749, %v748, %v746
    %751 = vrot.lane.b32.xlu0 %v750, 46
    %v752 = vpop.permute.xlu0 %751
    %vm753 = vcmask 392560
    %754 = vst.msk [vmem:[#allocation0] ss:$8 sm:$0xf] %vm753, %v752
    %s755 = scalar_lea.vmem %s0, 22
    %v756 = vld [vmem:[%s755] sm:$0x1]
    %s757 = scalar_lea.vmem %s0, 85
    %v758 = vld [vmem:[%s757] sm:$0x2]
    %vm759 = vcmask 1041409
    %v760 = vsel %vm759, %v758, %v756
    %s761 = scalar_lea.vmem %s0, 148
    %v762 = vld [vmem:[%s761] sm:$0x4]
    %vm763 = vcmask 1042434
    %v764 = vsel %vm763, %v762, %v760
    %s765 = scalar_lea.vmem %s0, 211
    %v766 = vld [vmem:[%s765] sm:$0x8]
    %vm767 = vcmask 1043459
    %v768 = vsel %vm767, %v766, %v764
    %769 = vrot.lane.b32.xlu0 %v768, 44
    %v770 = vpop.permute.xlu0 %769
    %vm771 = vcmask 376160
    %772 = vst.msk [vmem:[#allocation0] ss:$8 sm:$0xf] %vm771, %v770
    %s773 = scalar_lea.vmem %s0, 21
    %v774 = vld [vmem:[%s773] sm:$0x1]
    %s775 = scalar_lea.vmem %s0, 84
    %v776 = vld [vmem:[%s775] sm:$0x2]
    %vm777 = vcmask 1041409
    %v778 = vsel %vm777, %v776, %v774
    %s779 = scalar_lea.vmem %s0, 147
    %v780 = vld [vmem:[%s779] sm:$0x4]
    %vm781 = vcmask 1042434
    %v782 = vsel %vm781, %v780, %v778
    %s783 = scalar_lea.vmem %s0, 210
    %v784 = vld [vmem:[%s783] sm:$0x8]
    %vm785 = vcmask 1043459
    %v786 = vsel %vm785, %v784, %v782
    %787 = vrot.lane.b32.xlu0 %v786, 42
    %v788 = vpop.permute.xlu0 %787
    %vm789 = vcmask 359760
    %790 = vst.msk [vmem:[#allocation0] ss:$8 sm:$0xf] %vm789, %v788
    %s791 = scalar_lea.vmem %s0, 20
    %v792 = vld [vmem:[%s791] sm:$0x1]
    %s793 = scalar_lea.vmem %s0, 83
    %v794 = vld [vmem:[%s793] sm:$0x2]
    %vm795 = vcmask 1041409
    %v796 = vsel %vm795, %v794, %v792
    %s797 = scalar_lea.vmem %s0, 146
    %v798 = vld [vmem:[%s797] sm:$0x4]
    %vm799 = vcmask 1042434
    %v800 = vsel %vm799, %v798, %v796
    %s801 = scalar_lea.vmem %s0, 209
    %v802 = vld [vmem:[%s801] sm:$0x8]
    %vm803 = vcmask 1043459
    %v804 = vsel %vm803, %v802, %v800
    %805 = vrot.lane.b32.xlu0 %v804, 40
    %v806 = vpop.permute.xlu0 %805
    %vm807 = vcmask 343360
    %808 = vst.msk [vmem:[#allocation0] ss:$8 sm:$0xf] %vm807, %v806
    %s809 = scalar_lea.vmem %s0, 19
    %v810 = vld [vmem:[%s809] sm:$0x1]
    %s811 = scalar_lea.vmem %s0, 82
    %v812 = vld [vmem:[%s811] sm:$0x2]
    %vm813 = vcmask 1041409
    %v814 = vsel %vm813, %v812, %v810
    %s815 = scalar_lea.vmem %s0, 145
    %v816 = vld [vmem:[%s815] sm:$0x4]
    %vm817 = vcmask 1042434
    %v818 = vsel %vm817, %v816, %v814
    %s819 = scalar_lea.vmem %s0, 208
    %v820 = vld [vmem:[%s819] sm:$0x8]
    %vm821 = vcmask 1043459
    %v822 = vsel %vm821, %v820, %v818
    %823 = vrot.lane.b32.xlu0 %v822, 38
    %v824 = vpop.permute.xlu0 %823
    %vm825 = vcmask 326960
    %826 = vst.msk [vmem:[#allocation0] ss:$8 sm:$0xf] %vm825, %v824
    %s827 = scalar_lea.vmem %s0, 18
    %v828 = vld [vmem:[%s827] sm:$0x1]
    %s829 = scalar_lea.vmem %s0, 81
    %v830 = vld [vmem:[%s829] sm:$0x2]
    %vm831 = vcmask 1041409
    %v832 = vsel %vm831, %v830, %v828
    %s833 = scalar_lea.vmem %s0, 144
    %v834 = vld [vmem:[%s833] sm:$0x4]
    %vm835 = vcmask 1042434
    %v836 = vsel %vm835, %v834, %v832
    %s837 = scalar_lea.vmem %s0, 207
    %v838 = vld [vmem:[%s837] sm:$0x8]
    %vm839 = vcmask 1043459
    %v840 = vsel %vm839, %v838, %v836
    %841 = vrot.lane.b32.xlu0 %v840, 36
    %v842 = vpop.permute.xlu0 %841
    %vm843 = vcmask 310560
    %844 = vst.msk [vmem:[#allocation0] ss:$8 sm:$0xf] %vm843, %v842
    %s845 = scalar_lea.vmem %s0, 17
    %v846 = vld [vmem:[%s845] sm:$0x1]
    %s847 = scalar_lea.vmem %s0, 80
    %v848 = vld [vmem:[%s847] sm:$0x2]
    %vm849 = vcmask 1041409
    %v850 = vsel %vm849, %v848, %v846
    %s851 = scalar_lea.vmem %s0, 143
    %v852 = vld [vmem:[%s851] sm:$0x4]
    %vm853 = vcmask 1042434
    %v854 = vsel %vm853, %v852, %v850
    %s855 = scalar_lea.vmem %s0, 206
    %v856 = vld [vmem:[%s855] sm:$0x8]
    %vm857 = vcmask 1043459
    %v858 = vsel %vm857, %v856, %v854
    %859 = vrot.lane.b32.xlu0 %v858, 34
    %v860 = vpop.permute.xlu0 %859
    %vm861 = vcmask 294160
    %862 = vst.msk [vmem:[#allocation0] ss:$8 sm:$0xf] %vm861, %v860
    %s863 = scalar_lea.vmem %s0, 16
    %v864 = vld [vmem:[%s863] sm:$0x1]
    %s865 = scalar_lea.vmem %s0, 79
    %v866 = vld [vmem:[%s865] sm:$0x2]
    %vm867 = vcmask 1041409
    %v868 = vsel %vm867, %v866, %v864
    %s869 = scalar_lea.vmem %s0, 142
    %v870 = vld [vmem:[%s869] sm:$0x4]
    %vm871 = vcmask 1042434
    %v872 = vsel %vm871, %v870, %v868
    %s873 = scalar_lea.vmem %s0, 205
    %v874 = vld [vmem:[%s873] sm:$0x8]
    %vm875 = vcmask 1043459
    %v876 = vsel %vm875, %v874, %v872
    %877 = vrot.lane.b32.xlu0 %v876, 32
    %v878 = vpop.permute.xlu0 %877
    %vm879 = vcmask 277760
    %880 = vst.msk [vmem:[#allocation0] ss:$8 sm:$0xf] %vm879, %v878
    %s881 = scalar_lea.vmem %s0, 15
    %v882 = vld [vmem:[%s881] sm:$0x1]
    %s883 = scalar_lea.vmem %s0, 78
    %v884 = vld [vmem:[%s883] sm:$0x2]
    %vm885 = vcmask 1041409
    %v886 = vsel %vm885, %v884, %v882
    %s887 = scalar_lea.vmem %s0, 141
    %v888 = vld [vmem:[%s887] sm:$0x4]
    %vm889 = vcmask 1042434
    %v890 = vsel %vm889, %v888, %v886
    %s891 = scalar_lea.vmem %s0, 204
    %v892 = vld [vmem:[%s891] sm:$0x8]
    %vm893 = vcmask 1043459
    %v894 = vsel %vm893, %v892, %v890
    %895 = vrot.lane.b32.xlu0 %v894, 30
    %v896 = vpop.permute.xlu0 %895
    %vm897 = vcmask 261360
    %898 = vst.msk [vmem:[#allocation0] ss:$8 sm:$0xf] %vm897, %v896
    %s899 = scalar_lea.vmem %s0, 14
    %v900 = vld [vmem:[%s899] sm:$0x1]
    %s901 = scalar_lea.vmem %s0, 77
    %v902 = vld [vmem:[%s901] sm:$0x2]
    %vm903 = vcmask 1041409
    %v904 = vsel %vm903, %v902, %v900
    %s905 = scalar_lea.vmem %s0, 140
    %v906 = vld [vmem:[%s905] sm:$0x4]
    %vm907 = vcmask 1042434
    %v908 = vsel %vm907, %v906, %v904
    %s909 = scalar_lea.vmem %s0, 203
    %v910 = vld [vmem:[%s909] sm:$0x8]
    %vm911 = vcmask 1043459
    %v912 = vsel %vm911, %v910, %v908
    %913 = vrot.lane.b32.xlu0 %v912, 28
    %v914 = vpop.permute.xlu0 %913
    %vm915 = vcmask 244960
    %916 = vst.msk [vmem:[#allocation0] ss:$8 sm:$0xf] %vm915, %v914
    %s917 = scalar_lea.vmem %s0, 13
    %v918 = vld [vmem:[%s917] sm:$0x1]
    %s919 = scalar_lea.vmem %s0, 76
    %v920 = vld [vmem:[%s919] sm:$0x2]
    %vm921 = vcmask 1041409
    %v922 = vsel %vm921, %v920, %v918
    %s923 = scalar_lea.vmem %s0, 139
    %v924 = vld [vmem:[%s923] sm:$0x4]
    %vm925 = vcmask 1042434
    %v926 = vsel %vm925, %v924, %v922
    %s927 = scalar_lea.vmem %s0, 202
    %v928 = vld [vmem:[%s927] sm:$0x8]
    %vm929 = vcmask 1043459
    %v930 = vsel %vm929, %v928, %v926
    %931 = vrot.lane.b32.xlu0 %v930, 26
    %v932 = vpop.permute.xlu0 %931
    %vm933 = vcmask 228560
    %934 = vst.msk [vmem:[#allocation0] ss:$8 sm:$0xf] %vm933, %v932
    %s935 = scalar_lea.vmem %s0, 12
    %v936 = vld [vmem:[%s935] sm:$0x1]
    %s937 = scalar_lea.vmem %s0, 75
    %v938 = vld [vmem:[%s937] sm:$0x2]
    %vm939 = vcmask 1041409
    %v940 = vsel %vm939, %v938, %v936
    %s941 = scalar_lea.vmem %s0, 138
    %v942 = vld [vmem:[%s941] sm:$0x4]
    %vm943 = vcmask 1042434
    %v944 = vsel %vm943, %v942, %v940
    %s945 = scalar_lea.vmem %s0, 201
    %v946 = vld [vmem:[%s945] sm:$0x8]
    %vm947 = vcmask 1043459
    %v948 = vsel %vm947, %v946, %v944
    %949 = vrot.lane.b32.xlu0 %v948, 24
    %v950 = vpop.permute.xlu0 %949
    %vm951 = vcmask 212160
    %952 = vst.msk [vmem:[#allocation0] ss:$8 sm:$0xf] %vm951, %v950
    %s953 = scalar_lea.vmem %s0, 11
    %v954 = vld [vmem:[%s953] sm:$0x1]
    %s955 = scalar_lea.vmem %s0, 74
    %v956 = vld [vmem:[%s955] sm:$0x2]
    %vm957 = vcmask 1041409
    %v958 = vsel %vm957, %v956, %v954
    %s959 = scalar_lea.vmem %s0, 137
    %v960 = vld [vmem:[%s959] sm:$0x4]
    %vm961 = vcmask 1042434
    %v962 = vsel %vm961, %v960, %v958
    %s963 = scalar_lea.vmem %s0, 200
    %v964 = vld [vmem:[%s963] sm:$0x8]
    %vm965 = vcmask 1043459
    %v966 = vsel %vm965, %v964, %v962
    %967 = vrot.lane.b32.xlu0 %v966, 22
    %v968 = vpop.permute.xlu0 %967
    %vm969 = vcmask 195760
    %970 = vst.msk [vmem:[#allocation0] ss:$8 sm:$0xf] %vm969, %v968
    %s971 = scalar_lea.vmem %s0, 10
    %v972 = vld [vmem:[%s971] sm:$0x1]
    %s973 = scalar_lea.vmem %s0, 73
    %v974 = vld [vmem:[%s973] sm:$0x2]
    %vm975 = vcmask 1041409
    %v976 = vsel %vm975, %v974, %v972
    %s977 = scalar_lea.vmem %s0, 136
    %v978 = vld [vmem:[%s977] sm:$0x4]
    %vm979 = vcmask 1042434
    %v980 = vsel %vm979, %v978, %v976
    %s981 = scalar_lea.vmem %s0, 199
    %v982 = vld [vmem:[%s981] sm:$0x8]
    %vm983 = vcmask 1043459
    %v984 = vsel %vm983, %v982, %v980
    %985 = vrot.lane.b32.xlu0 %v984, 20
    %v986 = vpop.permute.xlu0 %985
    %vm987 = vcmask 179360
    %988 = vst.msk [vmem:[#allocation0] ss:$8 sm:$0xf] %vm987, %v986
    %s989 = scalar_lea.vmem %s0, 9
    %v990 = vld [vmem:[%s989] sm:$0x1]
    %s991 = scalar_lea.vmem %s0, 72
    %v992 = vld [vmem:[%s991] sm:$0x2]
    %vm993 = vcmask 1041409
    %v994 = vsel %vm993, %v992, %v990
    %s995 = scalar_lea.vmem %s0, 135
    %v996 = vld [vmem:[%s995] sm:$0x4]
    %vm997 = vcmask 1042434
    %v998 = vsel %vm997, %v996, %v994
    %s999 = scalar_lea.vmem %s0, 198
    %v1000 = vld [vmem:[%s999] sm:$0x8]
    %vm1001 = vcmask 1043459
    %v1002 = vsel %vm1001, %v1000, %v998
    %1003 = vrot.lane.b32.xlu0 %v1002, 18
    %v1004 = vpop.permute.xlu0 %1003
    %vm1005 = vcmask 162960
    %1006 = vst.msk [vmem:[#allocation0] ss:$8 sm:$0xf] %vm1005, %v1004
    %s1007 = scalar_lea.vmem %s0, 8
    %v1008 = vld [vmem:[%s1007] sm:$0x1]
    %s1009 = scalar_lea.vmem %s0, 71
    %v1010 = vld [vmem:[%s1009] sm:$0x2]
    %vm1011 = vcmask 1041409
    %v1012 = vsel %vm1011, %v1010, %v1008
    %s1013 = scalar_lea.vmem %s0, 134
    %v1014 = vld [vmem:[%s1013] sm:$0x4]
    %vm1015 = vcmask 1042434
    %v1016 = vsel %vm1015, %v1014, %v1012
    %s1017 = scalar_lea.vmem %s0, 197
    %v1018 = vld [vmem:[%s1017] sm:$0x8]
    %vm1019 = vcmask 1043459
    %v1020 = vsel %vm1019, %v1018, %v1016
    %1021 = vrot.lane.b32.xlu0 %v1020, 16
    %v1022 = vpop.permute.xlu0 %1021
    %vm1023 = vcmask 146560
    %1024 = vst.msk [vmem:[#allocation0] ss:$8 sm:$0xf] %vm1023, %v1022
    %s1025 = scalar_lea.vmem %s0, 7
    %v1026 = vld [vmem:[%s1025] sm:$0x1]
    %s1027 = scalar_lea.vmem %s0, 70
    %v1028 = vld [vmem:[%s1027] sm:$0x2]
    %vm1029 = vcmask 1041409
    %v1030 = vsel %vm1029, %v1028, %v1026
    %s1031 = scalar_lea.vmem %s0, 133
    %v1032 = vld [vmem:[%s1031] sm:$0x4]
    %vm1033 = vcmask 1042434
    %v1034 = vsel %vm1033, %v1032, %v1030
    %s1035 = scalar_lea.vmem %s0, 196
    %v1036 = vld [vmem:[%s1035] sm:$0x8]
    %vm1037 = vcmask 1043459
    %v1038 = vsel %vm1037, %v1036, %v1034
    %1039 = vrot.lane.b32.xlu0 %v1038, 14
    %v1040 = vpop.permute.xlu0 %1039
    %vm1041 = vcmask 130160
    %1042 = vst.msk [vmem:[#allocation0] ss:$8 sm:$0xf] %vm1041, %v1040
    %s1043 = scalar_lea.vmem %s0, 6
    %v1044 = vld [vmem:[%s1043] sm:$0x1]
    %s1045 = scalar_lea.vmem %s0, 69
    %v1046 = vld [vmem:[%s1045] sm:$0x2]
    %vm1047 = vcmask 1041409
    %v1048 = vsel %vm1047, %v1046, %v1044
    %s1049 = scalar_lea.vmem %s0, 132
    %v1050 = vld [vmem:[%s1049] sm:$0x4]
    %vm1051 = vcmask 1042434
    %v1052 = vsel %vm1051, %v1050, %v1048
    %s1053 = scalar_lea.vmem %s0, 195
    %v1054 = vld [vmem:[%s1053] sm:$0x8]
    %vm1055 = vcmask 1043459
    %v1056 = vsel %vm1055, %v1054, %v1052
    %1057 = vrot.lane.b32.xlu0 %v1056, 12
    %v1058 = vpop.permute.xlu0 %1057
    %vm1059 = vcmask 113760
    %1060 = vst.msk [vmem:[#allocation0] ss:$8 sm:$0xf] %vm1059, %v1058
    %s1061 = scalar_lea.vmem %s0, 5
    %v1062 = vld [vmem:[%s1061] sm:$0x1]
    %s1063 = scalar_lea.vmem %s0, 68
    %v1064 = vld [vmem:[%s1063] sm:$0x2]
    %vm1065 = vcmask 1041409
    %v1066 = vsel %vm1065, %v1064, %v1062
    %s1067 = scalar_lea.vmem %s0, 131
    %v1068 = vld [vmem:[%s1067] sm:$0x4]
    %vm1069 = vcmask 1042434
    %v1070 = vsel %vm1069, %v1068, %v1066
    %s1071 = scalar_lea.vmem %s0, 194
    %v1072 = vld [vmem:[%s1071] sm:$0x8]
    %vm1073 = vcmask 1043459
    %v1074 = vsel %vm1073, %v1072, %v1070
    %1075 = vrot.lane.b32.xlu0 %v1074, 10
    %v1076 = vpop.permute.xlu0 %1075
    %vm1077 = vcmask 97360
    %1078 = vst.msk [vmem:[#allocation0] ss:$8 sm:$0xf] %vm1077, %v1076
    %s1079 = scalar_lea.vmem %s0, 4
    %v1080 = vld [vmem:[%s1079] sm:$0x1]
    %s1081 = scalar_lea.vmem %s0, 67
    %v1082 = vld [vmem:[%s1081] sm:$0x2]
    %vm1083 = vcmask 1041409
    %v1084 = vsel %vm1083, %v1082, %v1080
    %s1085 = scalar_lea.vmem %s0, 130
    %v1086 = vld [vmem:[%s1085] sm:$0x4]
    %vm1087 = vcmask 1042434
    %v1088 = vsel %vm1087, %v1086, %v1084
    %s1089 = scalar_lea.vmem %s0, 193
    %v1090 = vld [vmem:[%s1089] sm:$0x8]
    %vm1091 = vcmask 1043459
    %v1092 = vsel %vm1091, %v1090, %v1088
    %1093 = vrot.lane.b32.xlu0 %v1092, 8
    %v1094 = vpop.permute.xlu0 %1093
    %vm1095 = vcmask 80960
    %1096 = vst.msk [vmem:[#allocation0] ss:$8 sm:$0xf] %vm1095, %v1094
    %s1097 = scalar_lea.vmem %s0, 3
    %v1098 = vld [vmem:[%s1097] sm:$0x1]
    %s1099 = scalar_lea.vmem %s0, 66
    %v1100 = vld [vmem:[%s1099] sm:$0x2]
    %vm1101 = vcmask 1041409
    %v1102 = vsel %vm1101, %v1100, %v1098
    %s1103 = scalar_lea.vmem %s0, 129
    %v1104 = vld [vmem:[%s1103] sm:$0x4]
    %vm1105 = vcmask 1042434
    %v1106 = vsel %vm1105, %v1104, %v1102
    %s1107 = scalar_lea.vmem %s0, 192
    %v1108 = vld [vmem:[%s1107] sm:$0x8]
    %vm1109 = vcmask 1043459
    %v1110 = vsel %vm1109, %v1108, %v1106
    %1111 = vrot.lane.b32.xlu0 %v1110, 6
    %v1112 = vpop.permute.xlu0 %1111
    %vm1113 = vcmask 64560
    %1114 = vst.msk [vmem:[#allocation0] ss:$8 sm:$0xf] %vm1113, %v1112
    %s1115 = scalar_lea.vmem %s0, 2
    %v1116 = vld [vmem:[%s1115] sm:$0x1]
    %s1117 = scalar_lea.vmem %s0, 65
    %v1118 = vld [vmem:[%s1117] sm:$0x2]
    %vm1119 = vcmask 1041409
    %v1120 = vsel %vm1119, %v1118, %v1116
    %s1121 = scalar_lea.vmem %s0, 128
    %v1122 = vld [vmem:[%s1121] sm:$0x4]
    %vm1123 = vcmask 1042434
    %v1124 = vsel %vm1123, %v1122, %v1120
    %s1125 = scalar_lea.vmem %s0, 191
    %v1126 = vld [vmem:[%s1125] sm:$0x8]
    %vm1127 = vcmask 1043459
    %v1128 = vsel %vm1127, %v1126, %v1124
    %1129 = vrot.lane.b32.xlu0 %v1128, 4
    %v1130 = vpop.permute.xlu0 %1129
    %vm1131 = vcmask 48160
    %1132 = vst.msk [vmem:[#allocation0] ss:$8 sm:$0xf] %vm1131, %v1130
    %s1133 = scalar_lea.vmem %s0, 1
    %v1134 = vld [vmem:[%s1133] sm:$0x1]
    %s1135 = scalar_lea.vmem %s0, 64
    %v1136 = vld [vmem:[%s1135] sm:$0x2]
    %vm1137 = vcmask 1041409
    %v1138 = vsel %vm1137, %v1136, %v1134
    %s1139 = scalar_lea.vmem %s0, 127
    %v1140 = vld [vmem:[%s1139] sm:$0x4]
    %vm1141 = vcmask 1042434
    %v1142 = vsel %vm1141, %v1140, %v1138
    %s1143 = scalar_lea.vmem %s0, 190
    %v1144 = vld [vmem:[%s1143] sm:$0x8]
    %vm1145 = vcmask 1043459
    %v1146 = vsel %vm1145, %v1144, %v1142
    %1147 = vrot.lane.b32.xlu0 %v1146, 2
    %v1148 = vpop.permute.xlu0 %1147
    %vm1149 = vcmask 31760
    %1150 = vst.msk [vmem:[#allocation0] ss:$8 sm:$0xf] %vm1149, %v1148
    %s1152 = ssub.s32 2, 1
    %v1153 = vld [vmem:[#allocation0] sm:%s1152]
    %s1155 = ssub.s32 2, 1
    %1156 = vst [vmem:[%s1] sm:%s1155] %v1153
    %s1157 = scalar_lea.vmem [#allocation0], 8
    %v1158 = vld [vmem:[%s1157] sm:%s1152]
    %s1160 = ssub.s32 2, 1
    %s1161 = scalar_lea.vmem %s1, 1
    %1162 = vst [vmem:[%s1161] sm:%s1160] %v1158
    %s1163 = scalar_lea.vmem [#allocation0], 16
    %v1164 = vld [vmem:[%s1163] sm:%s1152]
    %s1166 = ssub.s32 2, 1
    %s1167 = scalar_lea.vmem %s1, 2
    %1168 = vst [vmem:[%s1167] sm:%s1166] %v1164
    %s1169 = scalar_lea.vmem [#allocation0], 24
    %v1170 = vld [vmem:[%s1169] sm:%s1152]
    %s1172 = ssub.s32 2, 1
    %s1173 = scalar_lea.vmem %s1, 3
    %1174 = vst [vmem:[%s1173] sm:%s1172] %v1170

// kernel: complex_channel_attention.2
$region0: #{complex_channel_attention.2}
  #allocation0 [shape = 'u32[]', space=smem, size = 0x4, offset = 0x4, fixed_abs, tag = 'smem constant byte address 0x4 - core index']
  #allocation1 [shape = 'u32[72,128]{1,0:T(1,128)}', space=vmem, size = 0x9000, scoped, tag = 'internal scratch']
  #allocation2 [shape = 'f32[32,128]{1,0:T(8,128)}', space=vmem, size = 0x4000, scoped, tag = 'scratch operand']
  %s0 = inlined_call_operand.vmem [shape: f32[32,512], index: 0, kind: input, shape index: {}]
  %s1 = inlined_call_operand.vmem [shape: f32[1,512], index: 1, kind: input, shape index: {}]
  %s2 = inlined_call_operand.vmem [shape: f32[32,1], index: 2, kind: output, shape index: {}]
  %s3 = sld [smem:[#allocation0]]
  $region26: #{complex_channel_attention.2} parent=0
    _
  %s5 = ssub.s32 1, %s3
  %s6 = scalar_select 0, %s5, %s3
  // Predicated region
  $region2: #{complex_channel_attention.2} parent=0 // pred_check
    _
  $region3: #{complex_channel_attention.2} parent=0 // pred_check_branch
    %8 = sbr.rel (0) target = $region5
  $region4: #{complex_channel_attention.2} parent=0 // pred_region
    _
  $region5: #{complex_channel_attention.2} parent=0 // pred_fallthru
    _
  // Predicated region
  $region6: #{complex_channel_attention.2} parent=0 // pred_check
    _
  $region7: #{complex_channel_attention.2} parent=0 // pred_check_branch
    %10 = sbr.rel (0) target = $region9
  $region8: #{complex_channel_attention.2} parent=0 // pred_region
    _
  $region9: #{complex_channel_attention.2} parent=0 // pred_fallthru
    _
  %p11 = scmp.eq.s32.totalorder 0, 0
  // Predicated region
  $region10: #{complex_channel_attention.2} parent=0 // pred_check
    %p12 = pneg %p11
  $region11: #{complex_channel_attention.2} parent=0 // pred_check_branch
    %14 = sbr.rel (%p12) target = $region13
  $region12: #{complex_channel_attention.2} parent=0 // pred_region
    %15 = vst [vmem:[#allocation2] sm:$0xff] 0.0
    %16 = vst [vmem:[#allocation2 + $0x8] sm:$0xff] 0.0
    %17 = vst [vmem:[#allocation2 + $0x10] sm:$0xff] 0.0
    %18 = vst [vmem:[#allocation2 + $0x18] sm:$0xff] 0.0
  $region13: #{complex_channel_attention.2} parent=0 // pred_fallthru
    _
  %v19 = vld [vmem:[%s0] sm:$0xff]
  %v20 = vld [vmem:[%s0 + $0x8] sm:$0xff]
  %v21 = vld [vmem:[%s0 + $0x10] sm:$0xff]
  %v22 = vld [vmem:[%s0 + $0x18] sm:$0xff]
  %v23 = vld [vmem:[%s0 + $0x20] sm:$0xff]
  %v24 = vld [vmem:[%s0 + $0x28] sm:$0xff]
  %v25 = vld [vmem:[%s0 + $0x30] sm:$0xff]
  %v26 = vld [vmem:[%s0 + $0x38] sm:$0xff]
  %v27 = vld [vmem:[%s0 + $0x40] sm:$0xff]
  %v28 = vld [vmem:[%s0 + $0x48] sm:$0xff]
  %v29 = vld [vmem:[%s0 + $0x50] sm:$0xff]
  %v30 = vld [vmem:[%s0 + $0x58] sm:$0xff]
  %v31 = vld [vmem:[%s0 + $0x60] sm:$0xff]
  %v32 = vld [vmem:[%s0 + $0x68] sm:$0xff]
  %v33 = vld [vmem:[%s0 + $0x70] sm:$0xff]
  %v34 = vld [vmem:[%s0 + $0x78] sm:$0xff]
  %v35 = vmul.f32 %v19, %v19
  %v36 = vmul.f32 %v20, %v20
  %v37 = vmul.f32 %v21, %v21
  %v38 = vmul.f32 %v22, %v22
  %v39 = vmul.f32 %v23, %v23
  %v40 = vmul.f32 %v24, %v24
  %v41 = vmul.f32 %v25, %v25
  %v42 = vmul.f32 %v26, %v26
  %v43 = vmul.f32 %v27, %v27
  %v44 = vmul.f32 %v28, %v28
  %v45 = vmul.f32 %v29, %v29
  %v46 = vmul.f32 %v30, %v30
  %v47 = vmul.f32 %v31, %v31
  %v48 = vmul.f32 %v32, %v32
  %v49 = vmul.f32 %v33, %v33
  %v50 = vmul.f32 %v34, %v34
  %51 = vrot.lane.b32.xlu0 %v35, 127
  %v52 = vpop.permute.xlu0 %51
  %53 = vrot.lane.b32.xlu0 %v39, 127
  %v54 = vpop.permute.xlu0 %53
  %55 = vrot.lane.b32.xlu0 %v43, 127
  %v56 = vpop.permute.xlu0 %55
  %57 = vrot.lane.b32.xlu0 %v47, 127
  %v58 = vpop.permute.xlu0 %57
  %59 = vrot.lane.b32.xlu0 %v36, 127
  %v60 = vpop.permute.xlu0 %59
  %61 = vrot.lane.b32.xlu0 %v40, 127
  %v62 = vpop.permute.xlu0 %61
  %63 = vrot.lane.b32.xlu0 %v44, 127
  %v64 = vpop.permute.xlu0 %63
  %65 = vrot.lane.b32.xlu0 %v48, 127
  %v66 = vpop.permute.xlu0 %65
  %67 = vrot.lane.b32.xlu0 %v37, 127
  %v68 = vpop.permute.xlu0 %67
  %69 = vrot.lane.b32.xlu0 %v41, 127
  %v70 = vpop.permute.xlu0 %69
  %71 = vrot.lane.b32.xlu0 %v45, 127
  %v72 = vpop.permute.xlu0 %71
  %73 = vrot.lane.b32.xlu0 %v49, 127
  %v74 = vpop.permute.xlu0 %73
  %75 = vrot.lane.b32.xlu0 %v38, 127
  %v76 = vpop.permute.xlu0 %75
  %77 = vrot.lane.b32.xlu0 %v42, 127
  %v78 = vpop.permute.xlu0 %77
  %79 = vrot.lane.b32.xlu0 %v46, 127
  %v80 = vpop.permute.xlu0 %79
  %81 = vrot.lane.b32.xlu0 %v50, 127
  %v82 = vpop.permute.xlu0 %81
  %v83 = vlaneseq
  %v84 = vand.u32 %v83, 127
  %vm85 = vcmp.lt.s32.totalorder %v84, 127
  %v86 = vsel %vm85, %v68, %v76
  %v87 = vsel %vm85, %v70, %v78
  %v88 = vsel %vm85, %v72, %v80
  %v89 = vsel %vm85, %v74, %v82
  %v90 = vsel %vm85, %v60, %v68
  %v91 = vsel %vm85, %v62, %v70
  %v92 = vsel %vm85, %v64, %v72
  %v93 = vsel %vm85, %v66, %v74
  %v94 = vsel %vm85, %v52, %v60
  %v95 = vsel %vm85, %v54, %v62
  %v96 = vsel %vm85, %v56, %v64
  %v97 = vsel %vm85, %v58, %v66
  %v98 = vsel %vm85, %v76, %v52
  %v99 = vsel %vm85, %v78, %v54
  %v100 = vsel %vm85, %v80, %v56
  %v101 = vsel %vm85, %v82, %v58
  %v102 = vadd.f32 %v35, %v94
  %v103 = vadd.f32 %v36, %v90
  %v104 = vadd.f32 %v37, %v86
  %v105 = vadd.f32 %v38, %v98
  %v106 = vadd.f32 %v39, %v95
  %v107 = vadd.f32 %v40, %v91
  %v108 = vadd.f32 %v41, %v87
  %v109 = vadd.f32 %v42, %v99
  %v110 = vadd.f32 %v43, %v96
  %v111 = vadd.f32 %v44, %v92
  %v112 = vadd.f32 %v45, %v88
  %v113 = vadd.f32 %v46, %v100
  %v114 = vadd.f32 %v47, %v97
  %v115 = vadd.f32 %v48, %v93
  %v116 = vadd.f32 %v49, %v89
  %v117 = vadd.f32 %v50, %v101
  %v118 = vld [vmem:[%s1] sm:$0xf]
  %v120 = vperm.slane %v118, 0
  %v121 = vperm.slane %v118, 1
  %v122 = vperm.slane %v118, 2
  %v123 = vperm.slane %v118, 3
  %v128 = vmul.f32 %v102, %v120
  %v129 = vmul.f32 %v103, %v121
  %v130 = vmul.f32 %v104, %v122
  %v131 = vmul.f32 %v105, %v123
  %v132 = vmul.f32 %v106, %v120
  %v133 = vmul.f32 %v107, %v121
  %v134 = vmul.f32 %v108, %v122
  %v135 = vmul.f32 %v109, %v123
  %v136 = vmul.f32 %v110, %v120
  %v137 = vmul.f32 %v111, %v121
  %v138 = vmul.f32 %v112, %v122
  %v139 = vmul.f32 %v113, %v123
  %v140 = vmul.f32 %v114, %v120
  %v141 = vmul.f32 %v115, %v121
  %v142 = vmul.f32 %v116, %v122
  %v143 = vmul.f32 %v117, %v123
  %v144 = vrsqrt.pop %v128
  %v145 = vmul.f32 %v144, %v128
  %v146 = vmul.f32 %v145, %v144
  %v147 = vmul.f32 0.5, %v146
  %v148 = vsub.f32 1.5, %v147
  %v149 = vmul.f32 %v144, %v148
  %v150 = vmul.f32 %v128, %v149
  %vm151 = vcmp.eq.f32.partialorder %v128, inf
  %v152 = vsel %vm151, %v128, %v150
  %vm153 = vcmp.eq.f32.partialorder %v128, 0.0
  %v154 = vand.u32 %v128, 2147483648
  %v155 = vsel %vm153, %v154, %v152
  %v156 = vrsqrt.pop %v129
  %v157 = vmul.f32 %v156, %v129
  %v158 = vmul.f32 %v157, %v156
  %v159 = vmul.f32 0.5, %v158
  %v160 = vsub.f32 1.5, %v159
  %v161 = vmul.f32 %v156, %v160
  %v162 = vmul.f32 %v129, %v161
  %vm163 = vcmp.eq.f32.partialorder %v129, inf
  %v164 = vsel %vm163, %v129, %v162
  %vm165 = vcmp.eq.f32.partialorder %v129, 0.0
  %v166 = vand.u32 %v129, 2147483648
  %v167 = vsel %vm165, %v166, %v164
  %v168 = vrsqrt.pop %v130
  %v169 = vmul.f32 %v168, %v130
  %v170 = vmul.f32 %v169, %v168
  %v171 = vmul.f32 0.5, %v170
  %v172 = vsub.f32 1.5, %v171
  %v173 = vmul.f32 %v168, %v172
  %v174 = vmul.f32 %v130, %v173
  %vm175 = vcmp.eq.f32.partialorder %v130, inf
  %v176 = vsel %vm175, %v130, %v174
  %vm177 = vcmp.eq.f32.partialorder %v130, 0.0
  %v178 = vand.u32 %v130, 2147483648
  %v179 = vsel %vm177, %v178, %v176
  %v180 = vrsqrt.pop %v131
  %v181 = vmul.f32 %v180, %v131
  %v182 = vmul.f32 %v181, %v180
  %v183 = vmul.f32 0.5, %v182
  %v184 = vsub.f32 1.5, %v183
  %v185 = vmul.f32 %v180, %v184
  %v186 = vmul.f32 %v131, %v185
  %vm187 = vcmp.eq.f32.partialorder %v131, inf
  %v188 = vsel %vm187, %v131, %v186
  %vm189 = vcmp.eq.f32.partialorder %v131, 0.0
  %v190 = vand.u32 %v131, 2147483648
  %v191 = vsel %vm189, %v190, %v188
  %v192 = vrsqrt.pop %v132
  %v193 = vmul.f32 %v192, %v132
  %v194 = vmul.f32 %v193, %v192
  %v195 = vmul.f32 0.5, %v194
  %v196 = vsub.f32 1.5, %v195
  %v197 = vmul.f32 %v192, %v196
  %v198 = vmul.f32 %v132, %v197
  %vm199 = vcmp.eq.f32.partialorder %v132, inf
  %v200 = vsel %vm199, %v132, %v198
  %vm201 = vcmp.eq.f32.partialorder %v132, 0.0
  %v202 = vand.u32 %v132, 2147483648
  %v203 = vsel %vm201, %v202, %v200
  %v204 = vrsqrt.pop %v133
  %v205 = vmul.f32 %v204, %v133
  %v206 = vmul.f32 %v205, %v204
  %v207 = vmul.f32 0.5, %v206
  %v208 = vsub.f32 1.5, %v207
  %v209 = vmul.f32 %v204, %v208
  %v210 = vmul.f32 %v133, %v209
  %vm211 = vcmp.eq.f32.partialorder %v133, inf
  %v212 = vsel %vm211, %v133, %v210
  %vm213 = vcmp.eq.f32.partialorder %v133, 0.0
  %v214 = vand.u32 %v133, 2147483648
  %v215 = vsel %vm213, %v214, %v212
  %v216 = vrsqrt.pop %v134
  %v217 = vmul.f32 %v216, %v134
  %v218 = vmul.f32 %v217, %v216
  %v219 = vmul.f32 0.5, %v218
  %v220 = vsub.f32 1.5, %v219
  %v221 = vmul.f32 %v216, %v220
  %v222 = vmul.f32 %v134, %v221
  %vm223 = vcmp.eq.f32.partialorder %v134, inf
  %v224 = vsel %vm223, %v134, %v222
  %vm225 = vcmp.eq.f32.partialorder %v134, 0.0
  %v226 = vand.u32 %v134, 2147483648
  %v227 = vsel %vm225, %v226, %v224
  %v228 = vrsqrt.pop %v135
  %v229 = vmul.f32 %v228, %v135
  %v230 = vmul.f32 %v229, %v228
  %v231 = vmul.f32 0.5, %v230
  %v232 = vsub.f32 1.5, %v231
  %v233 = vmul.f32 %v228, %v232
  %v234 = vmul.f32 %v135, %v233
  %vm235 = vcmp.eq.f32.partialorder %v135, inf
  %v236 = vsel %vm235, %v135, %v234
  %vm237 = vcmp.eq.f32.partialorder %v135, 0.0
  %v238 = vand.u32 %v135, 2147483648
  %v239 = vsel %vm237, %v238, %v236
  %v240 = vrsqrt.pop %v136
  %v241 = vmul.f32 %v240, %v136
  %v242 = vmul.f32 %v241, %v240
  %v243 = vmul.f32 0.5, %v242
  %v244 = vsub.f32 1.5, %v243
  %v245 = vmul.f32 %v240, %v244
  %v246 = vmul.f32 %v136, %v245
  %vm247 = vcmp.eq.f32.partialorder %v136, inf
  %v248 = vsel %vm247, %v136, %v246
  %vm249 = vcmp.eq.f32.partialorder %v136, 0.0
  %v250 = vand.u32 %v136, 2147483648
  %v251 = vsel %vm249, %v250, %v248
  %v252 = vrsqrt.pop %v137
  %v253 = vmul.f32 %v252, %v137
  %v254 = vmul.f32 %v253, %v252
  %v255 = vmul.f32 0.5, %v254
  %v256 = vsub.f32 1.5, %v255
  %v257 = vmul.f32 %v252, %v256
  %v258 = vmul.f32 %v137, %v257
  %vm259 = vcmp.eq.f32.partialorder %v137, inf
  %v260 = vsel %vm259, %v137, %v258
  %vm261 = vcmp.eq.f32.partialorder %v137, 0.0
  %v262 = vand.u32 %v137, 2147483648
  %v263 = vsel %vm261, %v262, %v260
  %v264 = vrsqrt.pop %v138
  %v265 = vmul.f32 %v264, %v138
  %v266 = vmul.f32 %v265, %v264
  %v267 = vmul.f32 0.5, %v266
  %v268 = vsub.f32 1.5, %v267
  %v269 = vmul.f32 %v264, %v268
  %v270 = vmul.f32 %v138, %v269
  %vm271 = vcmp.eq.f32.partialorder %v138, inf
  %v272 = vsel %vm271, %v138, %v270
  %vm273 = vcmp.eq.f32.partialorder %v138, 0.0
  %v274 = vand.u32 %v138, 2147483648
  %v275 = vsel %vm273, %v274, %v272
  %v276 = vrsqrt.pop %v139
  %v277 = vmul.f32 %v276, %v139
  %v278 = vmul.f32 %v277, %v276
  %v279 = vmul.f32 0.5, %v278
  %v280 = vsub.f32 1.5, %v279
  %v281 = vmul.f32 %v276, %v280
  %v282 = vmul.f32 %v139, %v281
  %vm283 = vcmp.eq.f32.partialorder %v139, inf
  %v284 = vsel %vm283, %v139, %v282
  %vm285 = vcmp.eq.f32.partialorder %v139, 0.0
  %v286 = vand.u32 %v139, 2147483648
  %v287 = vsel %vm285, %v286, %v284
  %v288 = vrsqrt.pop %v140
  %v289 = vmul.f32 %v288, %v140
  %v290 = vmul.f32 %v289, %v288
  %v291 = vmul.f32 0.5, %v290
  %v292 = vsub.f32 1.5, %v291
  %v293 = vmul.f32 %v288, %v292
  %v294 = vmul.f32 %v140, %v293
  %vm295 = vcmp.eq.f32.partialorder %v140, inf
  %v296 = vsel %vm295, %v140, %v294
  %vm297 = vcmp.eq.f32.partialorder %v140, 0.0
  %v298 = vand.u32 %v140, 2147483648
  %v299 = vsel %vm297, %v298, %v296
  %v300 = vrsqrt.pop %v141
  %v301 = vmul.f32 %v300, %v141
  %v302 = vmul.f32 %v301, %v300
  %v303 = vmul.f32 0.5, %v302
  %v304 = vsub.f32 1.5, %v303
  %v305 = vmul.f32 %v300, %v304
  %v306 = vmul.f32 %v141, %v305
  %vm307 = vcmp.eq.f32.partialorder %v141, inf
  %v308 = vsel %vm307, %v141, %v306
  %vm309 = vcmp.eq.f32.partialorder %v141, 0.0
  %v310 = vand.u32 %v141, 2147483648
  %v311 = vsel %vm309, %v310, %v308
  %v312 = vrsqrt.pop %v142
  %v313 = vmul.f32 %v312, %v142
  %v314 = vmul.f32 %v313, %v312
  %v315 = vmul.f32 0.5, %v314
  %v316 = vsub.f32 1.5, %v315
  %v317 = vmul.f32 %v312, %v316
  %v318 = vmul.f32 %v142, %v317
  %vm319 = vcmp.eq.f32.partialorder %v142, inf
  %v320 = vsel %vm319, %v142, %v318
  %vm321 = vcmp.eq.f32.partialorder %v142, 0.0
  %v322 = vand.u32 %v142, 2147483648
  %v323 = vsel %vm321, %v322, %v320
  %v324 = vrsqrt.pop %v143
  %v325 = vmul.f32 %v324, %v143
  %v326 = vmul.f32 %v325, %v324
  %v327 = vmul.f32 0.5, %v326
  %v328 = vsub.f32 1.5, %v327
  %v329 = vmul.f32 %v324, %v328
  %v330 = vmul.f32 %v143, %v329
  %vm331 = vcmp.eq.f32.partialorder %v143, inf
  %v332 = vsel %vm331, %v143, %v330
  %vm333 = vcmp.eq.f32.partialorder %v143, 0.0
  %v334 = vand.u32 %v143, 2147483648
  %v335 = vsel %vm333, %v334, %v332
  %v336 = vadd.f32 %v155, %v167
  %v337 = vadd.f32 %v203, %v215
  %v338 = vadd.f32 %v251, %v263
  %v339 = vadd.f32 %v299, %v311
  %v340 = vadd.f32 %v336, %v179
  %v341 = vadd.f32 %v337, %v227
  %v342 = vadd.f32 %v338, %v275
  %v343 = vadd.f32 %v339, %v323
  %v344 = vadd.f32 %v340, %v191
  %v345 = vadd.f32 %v341, %v239
  %v346 = vadd.f32 %v342, %v287
  %v347 = vadd.f32 %v343, %v335
  %v348 = vld [vmem:[#allocation2] sm:$0xff]
  %v349 = vld [vmem:[#allocation2 + $0x8] sm:$0xff]
  %v350 = vld [vmem:[#allocation2 + $0x10] sm:$0xff]
  %v351 = vld [vmem:[#allocation2 + $0x18] sm:$0xff]
  %v352 = vadd.f32 %v348, %v344
  %v353 = vadd.f32 %v349, %v345
  %v354 = vadd.f32 %v350, %v346
  %v355 = vadd.f32 %v351, %v347
  %356 = vst [vmem:[#allocation2] sm:$0xff] %v352
  %357 = vst [vmem:[#allocation2 + $0x8] sm:$0xff] %v353
  %358 = vst [vmem:[#allocation2 + $0x10] sm:$0xff] %v354
  %359 = vst [vmem:[#allocation2 + $0x18] sm:$0xff] %v355
  // Predicated region
  $region14: #{complex_channel_attention.2} parent=0 // pred_check
    %p360 = pneg %p11
  $region15: #{complex_channel_attention.2} parent=0 // pred_check_branch
    %362 = sbr.rel (%p360) target = $region17
  $region16: #{complex_channel_attention.2} parent=0 // pred_region
    %v363 = vld [vmem:[#allocation2] sm:$0xff]
    %v364 = vld [vmem:[#allocation2 + $0x8] sm:$0xff]
    %v365 = vld [vmem:[#allocation2 + $0x10] sm:$0xff]
    %v366 = vld [vmem:[#allocation2 + $0x18] sm:$0xff]
    %367 = vadd.xlane.f32.xlu0 %v363
    %v368 = vpop.xlane.xlu0 %367
    %369 = vadd.xlane.f32.xlu0 %v364
    %v370 = vpop.xlane.xlu0 %369
    %371 = vadd.xlane.f32.xlu0 %v365
    %v372 = vpop.xlane.xlu0 %371
    %373 = vadd.xlane.f32.xlu0 %v366
    %v374 = vpop.xlane.xlu0 %373
    %vm375 = vcmask 7168
    %376 = vst.msk [vmem:[%s2] sm:$0xff] %vm375, %v368
    %377 = vst.msk [vmem:[%s2 + $0x8] sm:$0xff] %vm375, %v370
    %378 = vst.msk [vmem:[%s2 + $0x10] sm:$0xff] %vm375, %v372
    %379 = vst.msk [vmem:[%s2 + $0x18] sm:$0xff] %vm375, %v374
  $region17: #{complex_channel_attention.2} parent=0 // pred_fallthru
    _
  // Predicated region
  $region18: #{complex_channel_attention.2} parent=0 // pred_check
    _
  $region19: #{complex_channel_attention.2} parent=0 // pred_check_branch
    %381 = sbr.rel (0) target = $region21
  $region20: #{complex_channel_attention.2} parent=0 // pred_region
    _
  $region21: #{complex_channel_attention.2} parent=0 // pred_fallthru
    _
  // Predicated region
  $region22: #{complex_channel_attention.2} parent=0 // pred_check
    _
  $region23: #{complex_channel_attention.2} parent=0 // pred_check_branch
    %383 = sbr.rel (0) target = $region25
  $region24: #{complex_channel_attention.2} parent=0 // pred_region
    _
  $region25: #{complex_channel_attention.2} parent=0 // pred_fallthru
    _

// kernel: complex_channel_attention.3
$region0: #{complex_channel_attention.3}
  #allocation0 [shape = 'u32[]', space=smem, size = 0x4, offset = 0x4, fixed_abs, tag = 'smem constant byte address 0x4 - core index']
  #allocation1 [shape = 'u32[72,128]{1,0:T(1,128)}', space=vmem, size = 0x9000, scoped, tag = 'internal scratch']
  %s0 = inlined_call_operand.vmem [shape: f32[32,512], index: 0, kind: input, shape index: {}]
  %s1 = inlined_call_operand.vmem [shape: f32[32,1], index: 1, kind: input, shape index: {}]
  %s2 = inlined_call_operand.vmem [shape: f32[32,512], index: 2, kind: output, shape index: {}]
  %s3 = sld [smem:[#allocation0]]
  $region18: #{complex_channel_attention.3} parent=0
    _
  %s5 = ssub.s32 1, %s3
  %s6 = scalar_select 0, %s5, %s3
  // Predicated region
  $region2: #{complex_channel_attention.3} parent=0 // pred_check
    _
  $region3: #{complex_channel_attention.3} parent=0 // pred_check_branch
    %8 = sbr.rel (0) target = $region5
  $region4: #{complex_channel_attention.3} parent=0 // pred_region
    _
  $region5: #{complex_channel_attention.3} parent=0 // pred_fallthru
    _
  // Predicated region
  $region6: #{complex_channel_attention.3} parent=0 // pred_check
    _
  $region7: #{complex_channel_attention.3} parent=0 // pred_check_branch
    %10 = sbr.rel (0) target = $region9
  $region8: #{complex_channel_attention.3} parent=0 // pred_region
    _
  $region9: #{complex_channel_attention.3} parent=0 // pred_fallthru
    _
  %v11 = vld [vmem:[%s0] sm:$0xff]
  %v12 = vld [vmem:[%s0 + $0x8] sm:$0xff]
  %v13 = vld [vmem:[%s0 + $0x10] sm:$0xff]
  %v14 = vld [vmem:[%s0 + $0x18] sm:$0xff]
  %v15 = vld [vmem:[%s0 + $0x20] sm:$0xff]
  %v16 = vld [vmem:[%s0 + $0x28] sm:$0xff]
  %v17 = vld [vmem:[%s0 + $0x30] sm:$0xff]
  %v18 = vld [vmem:[%s0 + $0x38] sm:$0xff]
  %v19 = vld [vmem:[%s0 + $0x40] sm:$0xff]
  %v20 = vld [vmem:[%s0 + $0x48] sm:$0xff]
  %v21 = vld [vmem:[%s0 + $0x50] sm:$0xff]
  %v22 = vld [vmem:[%s0 + $0x58] sm:$0xff]
  %v23 = vld [vmem:[%s0 + $0x60] sm:$0xff]
  %v24 = vld [vmem:[%s0 + $0x68] sm:$0xff]
  %v25 = vld [vmem:[%s0 + $0x70] sm:$0xff]
  %v26 = vld [vmem:[%s0 + $0x78] sm:$0xff]
  %v27 = vld [vmem:[%s1] sm:$0xff]
  %v28 = vld [vmem:[%s1 + $0x8] sm:$0xff]
  %v29 = vld [vmem:[%s1 + $0x10] sm:$0xff]
  %v30 = vld [vmem:[%s1 + $0x18] sm:$0xff]
  %32 = vset.pattern.permute.xlu0 0
  %33 = vperm.xlu0 %32, %v27
  %v34 = vpop.permute.xlu0 %33
  %37 = vset.pattern.permute.xlu0 0
  %38 = vperm.xlu0 %37, %v28
  %v39 = vpop.permute.xlu0 %38
  %42 = vset.pattern.permute.xlu0 0
  %43 = vperm.xlu0 %42, %v29
  %v44 = vpop.permute.xlu0 %43
  %47 = vset.pattern.permute.xlu0 0
  %48 = vperm.xlu0 %47, %v30
  %v49 = vpop.permute.xlu0 %48
  %v51 = vmul.f32 %v11, %v34
  %v52 = vmul.f32 %v12, %v34
  %v53 = vmul.f32 %v13, %v34
  %v54 = vmul.f32 %v14, %v34
  %v55 = vmul.f32 %v15, %v39
  %v56 = vmul.f32 %v16, %v39
  %v57 = vmul.f32 %v17, %v39
  %v58 = vmul.f32 %v18, %v39
  %v59 = vmul.f32 %v19, %v44
  %v60 = vmul.f32 %v20, %v44
  %v61 = vmul.f32 %v21, %v44
  %v62 = vmul.f32 %v22, %v44
  %v63 = vmul.f32 %v23, %v49
  %v64 = vmul.f32 %v24, %v49
  %v65 = vmul.f32 %v25, %v49
  %v66 = vmul.f32 %v26, %v49
  %67 = vst [vmem:[%s2] sm:$0xff] %v51
  %68 = vst [vmem:[%s2 + $0x8] sm:$0xff] %v52
  %69 = vst [vmem:[%s2 + $0x10] sm:$0xff] %v53
  %70 = vst [vmem:[%s2 + $0x18] sm:$0xff] %v54
  %71 = vst [vmem:[%s2 + $0x20] sm:$0xff] %v55
  %72 = vst [vmem:[%s2 + $0x28] sm:$0xff] %v56
  %73 = vst [vmem:[%s2 + $0x30] sm:$0xff] %v57
  %74 = vst [vmem:[%s2 + $0x38] sm:$0xff] %v58
  %75 = vst [vmem:[%s2 + $0x40] sm:$0xff] %v59
  %76 = vst [vmem:[%s2 + $0x48] sm:$0xff] %v60
  %77 = vst [vmem:[%s2 + $0x50] sm:$0xff] %v61
  %78 = vst [vmem:[%s2 + $0x58] sm:$0xff] %v62
  %79 = vst [vmem:[%s2 + $0x60] sm:$0xff] %v63
  %80 = vst [vmem:[%s2 + $0x68] sm:$0xff] %v64
  %81 = vst [vmem:[%s2 + $0x70] sm:$0xff] %v65
  %82 = vst [vmem:[%s2 + $0x78] sm:$0xff] %v66
  // Predicated region
  $region10: #{complex_channel_attention.3} parent=0 // pred_check
    _
  $region11: #{complex_channel_attention.3} parent=0 // pred_check_branch
    %84 = sbr.rel (0) target = $region13
  $region12: #{complex_channel_attention.3} parent=0 // pred_region
    _
  $region13: #{complex_channel_attention.3} parent=0 // pred_fallthru
    _
  // Predicated region
  $region14: #{complex_channel_attention.3} parent=0 // pred_check
    _
  $region15: #{complex_channel_attention.3} parent=0 // pred_check_branch
    %86 = sbr.rel (0) target = $region17
  $region16: #{complex_channel_attention.3} parent=0 // pred_region
    _
  $region17: #{complex_channel_attention.3} parent=0 // pred_fallthru
    _

</llo_original>
